<compile_context>
chip_gen: v5e
topology: v5e:2x2
jax: 0.10.0
libtpu: 0.0.40
codegen_flags: <defaults>
</compile_context>

<pallas_src>
import math
from functools import partial

import jax
import jax.numpy as jnp
from jax.experimental import pallas as pl
from jax.experimental.pallas import tpu as pltpu


def _round_up(x, m):
    return (x + m - 1) // m * m


# ----------------------------- Pallas kernels -----------------------------

def _ln_kernel(x_ref, g_ref, b_ref, o_ref, *, eps):
    x = x_ref[...].astype(jnp.float32)
    mean = jnp.mean(x, axis=-1, keepdims=True)
    xc = x - mean
    var = jnp.mean(xc * xc, axis=-1, keepdims=True)
    inv = jax.lax.rsqrt(var + eps)
    y = xc * inv * g_ref[...] + b_ref[...]
    o_ref[...] = y.astype(o_ref.dtype)


def _mm_kernel(*refs, has_bias, has_res, act, fuse_ln, n_valid, eps):
    """acc += A@B (k-reduction); epilogue: +bias, GELU, +residual, [LayerNorm]."""
    a_ref, b_ref = refs[0], refs[1]
    idx = 2
    bias_ref = res_ref = g_ref = be_ref = None
    if has_bias:
        bias_ref = refs[idx]; idx += 1
    if has_res:
        res_ref = refs[idx]; idx += 1
    if fuse_ln:
        g_ref, be_ref = refs[idx], refs[idx + 1]; idx += 2
    if fuse_ln:
        o_ref, ln_ref = refs[idx], refs[idx + 1]; idx += 2
    else:
        o_ref = refs[idx]; idx += 1
        ln_ref = None
    acc_ref = refs[idx]

    @pl.when(pl.program_id(2) == 0)
    def _():
        acc_ref[...] = jnp.zeros_like(acc_ref)

    acc_ref[...] += jnp.dot(a_ref[...], b_ref[...],
                            preferred_element_type=jnp.float32)

    # Only materialize output tiles on the final K step (saves K-1 stores).
    @pl.when(pl.program_id(2) == pl.num_programs(2) - 1)
    def _():
        y = acc_ref[...]
        if has_bias:
            y = y + bias_ref[...]
        if act == "gelu":
            # matches the module's GELU: 0.5*x*(1+tanh(sqrt(2/pi)*(x+0.044715*x^3)))
            c = math.sqrt(2.0 / math.pi)
            y = 0.5 * y * (1.0 + jnp.tanh(c * (y + 0.044715 * y * y * y)))
        if has_res:
            y = y + res_ref[...].astype(jnp.float32)
        o_ref[...] = y.astype(o_ref.dtype)

        if fuse_ln:
            tn = y.shape[-1]
            if n_valid < tn:          # mask out padded feature columns
                lane = jax.lax.broadcasted_iota(jnp.int32, y.shape, 1)
                valid = lane < n_valid
                ys = jnp.where(valid, y, 0.0)
            else:
                valid = None
                ys = y
            inv_n = 1.0 / float(n_valid)
            mean = jnp.sum(ys, axis=-1, keepdims=True) * inv_n
            xc = ys - mean
            if valid is not None:
                xc = jnp.where(valid, xc, 0.0)
            var = jnp.sum(xc * xc, axis=-1, keepdims=True) * inv_n
            inv = jax.lax.rsqrt(var + eps)
            ln = xc * inv * g_ref[...] + be_ref[...]
            ln_ref[...] = ln.astype(ln_ref.dtype)


def _attn_kernel(q_ref, k_ref, v_ref, o_ref, *, scale):
    """Full attention for a block of (batch*head) groups: softmax(qk^T*scale)v."""
    q = q_ref[...]                    # (Gb, N, Dh) bf16
    k = k_ref[...]
    v = v_ref[...]
    s = jnp.einsum('gnd,gmd->gnm', q, k,
                   preferred_element_type=jnp.float32) * scale
    s = s - jnp.max(s, axis=-1, keepdims=True)
    p = jnp.exp(s)
    l = jnp.sum(p, axis=-1, keepdims=True)
    o = jnp.einsum('gnm,gmd->gnd', p.astype(v.dtype), v,
                   preferred_element_type=jnp.float32)
    o_ref[...] = (o * pl.reciprocal(l, approx=True)).astype(o_ref.dtype)


# ----------------------------- wrappers -----------------------------------

def layernorm(x, gamma, beta, eps=1e-5, out_dtype=jnp.bfloat16):
    """Row-wise LayerNorm over the last dim; emits bf16 for the next matmul."""
    M, D = x.shape
    if M <= 1024:
        tr = _round_up(max(M, 8), 8)
        Mp = tr
    else:
        tr = 256
        Mp = _round_up(M, tr)
    x_p = jnp.pad(x, ((0, Mp - M), (0, 0))) if Mp != M else x
    g = gamma.astype(jnp.float32).reshape(1, D)
    b = beta.astype(jnp.float32).reshape(1, D)
    out = pl.pallas_call(
        partial(_ln_kernel, eps=eps),
        out_shape=jax.ShapeDtypeStruct((Mp, D), out_dtype),
        grid_spec=pltpu.PrefetchScalarGridSpec(
            num_scalar_prefetch=0,
            grid=(Mp // tr,),
            in_specs=[pl.BlockSpec((tr, D), lambda i: (i, 0)),
                      pl.BlockSpec((1, D), lambda i: (0, 0)),
                      pl.BlockSpec((1, D), lambda i: (0, 0))],
            out_specs=pl.BlockSpec((tr, D), lambda i: (i, 0))),
        compiler_params=pltpu.CompilerParams(
            dimension_semantics=("parallel",)),
    )(x_p, g, b)
    return out[:M] if Mp != M else out


def fused_matmul(a, w, bias=None, residual=None, act=None,
                 ln_params=None, ln_eps=1e-5, out_dtype=jnp.bfloat16):
    """out = act(a @ w + bias) + residual  (bf16 MXU, f32 accumulate).

    If ln_params=(gamma, beta) is given, also returns LayerNorm(out) in bf16,
    fused into the matmul epilogue when the full output width fits one tile.
    """
    M, K = a.shape
    K2, N = w.shape
    assert K == K2
    want_ln = ln_params is not None

    # ---- tile / padding selection (avoid padding for unaligned K / N) ----
    if M <= 128:
        tm = _round_up(max(M, 8), 8)
        Mp = tm
    else:
        tm = 128
        Mp = _round_up(M, tm)

    if K % 128 == 0:
        tk = 512 if K % 512 == 0 else (256 if K % 256 == 0 else 128)
        Kp = K
    elif K <= 2048:
        tk, Kp = K, K                  # full-dim block: no padding needed
    else:
        tk = 128
        Kp = _round_up(K, 128)

    if want_ln and N <= 2048:
        tn, Np = N, N                  # whole feature dim in one tile -> LN fuses
    elif N % 128 == 0:
        tn = 256 if (N % 256 == 0 and N >= 512) else 128
        Np = N
    elif N <= 2048:
        tn, Np = N, N
    else:
        tn = 128
        Np = _round_up(N, 128)

    fuse_ln = want_ln and (Np == tn)

    a_bf = a.astype(jnp.bfloat16)
    if (Mp, Kp) != (M, K):
        a_bf = jnp.pad(a_bf, ((0, Mp - M), (0, Kp - K)))
    w_bf = w.astype(jnp.bfloat16)
    if (Kp, Np) != (K, N):
        w_bf = jnp.pad(w_bf, ((0, Kp - K), (0, Np - N)))

    inputs = [a_bf, w_bf]
    in_specs = [pl.BlockSpec((tm, tk), lambda i, j, k: (i, k)),
                pl.BlockSpec((tk, tn), lambda i, j, k: (k, j))]
    if bias is not None:
        b_p = bias.astype(jnp.float32).reshape(1, N)
        if Np != N:
            b_p = jnp.pad(b_p, ((0, 0), (0, Np - N)))
        inputs.append(b_p)
        in_specs.append(pl.BlockSpec((1, tn), lambda i, j, k: (0, j)))
    if residual is not None:
        r_p = residual.astype(jnp.float32)
        if (Mp, Np) != (M, N):
            r_p = jnp.pad(r_p, ((0, Mp - M), (0, Np - N)))
        inputs.append(r_p)
        in_specs.append(pl.BlockSpec((tm, tn), lambda i, j, k: (i, j)))
    if fuse_ln:
        g_p = ln_params[0].astype(jnp.float32).reshape(1, N)
        be_p = ln_params[1].astype(jnp.float32).reshape(1, N)
        if Np != N:
            g_p = jnp.pad(g_p, ((0, 0), (0, Np - N)))
            be_p = jnp.pad(be_p, ((0, 0), (0, Np - N)))
        inputs += [g_p, be_p]
        in_specs += [pl.BlockSpec((1, tn), lambda i, j, k: (0, j)),
                     pl.BlockSpec((1, tn), lambda i, j, k: (0, j))]

    o_spec = pl.BlockSpec((tm, tn), lambda i, j, k: (i, j))
    if fuse_ln:
        out_shape = (jax.ShapeDtypeStruct((Mp, Np), out_dtype),
                     jax.ShapeDtypeStruct((Mp, Np), jnp.bfloat16))
        out_specs = [o_spec, pl.BlockSpec((tm, tn), lambda i, j, k: (i, j))]
    else:
        out_shape = jax.ShapeDtypeStruct((Mp, Np), out_dtype)
        out_specs = o_spec

    res = pl.pallas_call(
        partial(_mm_kernel, has_bias=bias is not None,
                has_res=residual is not None, act=act,
                fuse_ln=fuse_ln, n_valid=N, eps=ln_eps),
        out_shape=out_shape,
        grid_spec=pltpu.PrefetchScalarGridSpec(
            num_scalar_prefetch=0,
            grid=(Mp // tm, Np // tn, Kp // tk),
            in_specs=in_specs,
            out_specs=out_specs,
            scratch_shapes=[pltpu.VMEM((tm, tn), jnp.float32)]),
        compiler_params=pltpu.CompilerParams(
            dimension_semantics=("parallel", "parallel", "arbitrary")),
    )(*inputs)

    if fuse_ln:
        out, ln_out = res
    else:
        out, ln_out = res, None
    if (Mp, Np) != (M, N):
        out = out[:M, :N]
        if ln_out is not None:
            ln_out = ln_out[:M, :N]
    if want_ln and not fuse_ln:
        ln_out = layernorm(out, ln_params[0], ln_params[1], eps=ln_eps)
    if want_ln:
        return out, ln_out
    return out


def attention(q, k, v, scale, out_dtype=jnp.bfloat16):
    """q, k, v: (B*H, N, Dh) bf16 -> (B*H, N, Dh)."""
    G, N, Dh = q.shape
    # Pick the largest group-block (divisor of G) that keeps the working set small.
    per_g = 4 * N * Dh * 2 + N * N * 4        # q,k,v,out (bf16) + scores (f32)
    budget = 6 * 1024 * 1024
    gb = 1
    for d in range(G, 0, -1):
        if G % d == 0 and d * per_g * 2 <= budget:
            gb = d
            break
    return pl.pallas_call(
        partial(_attn_kernel, scale=scale),
        out_shape=jax.ShapeDtypeStruct((G, N, Dh), out_dtype),
        grid_spec=pltpu.PrefetchScalarGridSpec(
            num_scalar_prefetch=0,
            grid=(G // gb,),
            in_specs=[pl.BlockSpec((gb, N, Dh), lambda g: (g, 0, 0))] * 3,
            out_specs=pl.BlockSpec((gb, N, Dh), lambda g: (g, 0, 0))),
        compiler_params=pltpu.CompilerParams(
            dimension_semantics=("parallel",)),
    )(q, k, v)


# ----------------------------- parameters ---------------------------------

def init_params(key, dim, depth, heads, dim_head, mlp_dim):
    inner = heads * dim_head

    def linear(k, fan_in, fan_out, bias=True):
        # nn.Linear default init: U(-1/sqrt(fan_in), 1/sqrt(fan_in))
        bound = 1.0 / math.sqrt(fan_in)
        kw, kb = jax.random.split(k)
        w = jax.random.uniform(kw, (fan_in, fan_out), jnp.float32, -bound, bound)
        b = (jax.random.uniform(kb, (fan_out,), jnp.float32, -bound, bound)
             if bias else None)
        return w, b

    layers = []
    keys = jax.random.split(key, depth * 4)
    for d in range(depth):
        w_qkv, _ = linear(keys[4 * d + 0], dim, inner * 3, bias=False)
        w_out, b_out = linear(keys[4 * d + 1], inner, dim)
        w1, b1 = linear(keys[4 * d + 2], dim, mlp_dim)
        w2, b2 = linear(keys[4 * d + 3], mlp_dim, dim)
        layers.append(dict(
            ln1_g=jnp.ones((dim,), jnp.float32),
            ln1_b=jnp.zeros((dim,), jnp.float32),
            w_qkv=w_qkv, w_out=w_out, b_out=b_out,
            ln2_g=jnp.ones((dim,), jnp.float32),
            ln2_b=jnp.zeros((dim,), jnp.float32),
            w1=w1, b1=b1, w2=w2, b2=b2))
    return layers


# ----------------------------- forward ------------------------------------

def transformer_forward(layers, x, *, heads, dim_head, project_out=True,
                        mask=None):
    # TODO(synk): mask != None path of Attention.forward is not implemented.
    assert mask is None
    B, N, D = x.shape
    H, Dh = heads, dim_head
    inner = H * Dh
    scale = Dh ** (-0.5)
    M = B * N
    depth = len(layers)

    xf = x.reshape(M, D).astype(jnp.float32)          # residual stream in f32
    # LayerNorm for the first layer's attention (nothing upstream to fuse into).
    y = layernorm(xf, layers[0]['ln1_g'], layers[0]['ln1_b'])

    for d, layer in enumerate(layers):
        # ---- x = x + Attention(LayerNorm(x)) ----
        qkv = fused_matmul(y, layer['w_qkv'], out_dtype=jnp.bfloat16)
        qkv = qkv.reshape(B, N, 3, H, Dh).transpose(2, 0, 3, 1, 4)  # (3,B,H,N,Dh)
        q = qkv[0].reshape(B * H, N, Dh)
        k = qkv[1].reshape(B * H, N, Dh)
        v = qkv[2].reshape(B * H, N, Dh)
        ao = attention(q, k, v, scale)                              # (B*H,N,Dh)
        ao = ao.reshape(B, H, N, Dh).transpose(0, 2, 1, 3).reshape(M, inner)

        if project_out:
            # out-projection + bias + residual, with the following LN2 fused.
            xf, y = fused_matmul(ao, layer['w_out'], bias=layer['b_out'],
                                 residual=xf,
                                 ln_params=(layer['ln2_g'], layer['ln2_b']),
                                 out_dtype=jnp.float32)
        else:
            xf = xf + ao.astype(jnp.float32)          # to_out = Identity case
            y = layernorm(xf, layer['ln2_g'], layer['ln2_b'])

        # ---- x = x + FeedForward(LayerNorm(x)) ----
        h = fused_matmul(y, layer['w1'], bias=layer['b1'], act="gelu",
                         out_dtype=jnp.bfloat16)
        if d + 1 < depth:
            nxt = layers[d + 1]
            # second FFN matmul + bias + residual, with next layer's LN1 fused.
            xf, y = fused_matmul(h, layer['w2'], bias=layer['b2'],
                                 residual=xf,
                                 ln_params=(nxt['ln1_g'], nxt['ln1_b']),
                                 out_dtype=jnp.float32)
        else:
            xf = fused_matmul(h, layer['w2'], bias=layer['b2'],
                              residual=xf, out_dtype=jnp.float32)
    return xf.reshape(B, N, D)


if __name__ == "__main__":
    key = jax.random.PRNGKey(0)
    pkey, xkey = jax.random.split(key)

    dim, depth, heads, dim_head, mlp_dim = 64, 2, 4, 16, 128
    B, N = 2, 16
    project_out = not (heads == 1 and dim_head == dim)

    layers = init_params(pkey, dim, depth, heads, dim_head, mlp_dim)
    x = jax.random.normal(xkey, (B, N, dim), jnp.float32)

    fwd = jax.jit(partial(transformer_forward, heads=heads, dim_head=dim_head,
                          project_out=project_out))
    out = fwd(layers, x)
    jax.block_until_ready(out)

    assert out.shape == (B, N, dim), out.shape
    assert bool(jnp.all(jnp.isfinite(out)))
    print("KERNEL_OK")
</pallas_src>

<mosaic_0001>
module attributes {stable_mosaic.version = 11 : i64} {
  func.func @_mm_kernel(%arg0: i32, %arg1: i32, %arg2: i32, %arg3: memref<32x64xbf16, #tpu.memory_space<vmem>>, %arg4: memref<64x192xbf16, #tpu.memory_space<vmem>>, %arg5: memref<32x192xbf16, #tpu.memory_space<vmem>>, %arg6: memref<32x192xf32, #tpu.memory_space<vmem>>) attributes {dimension_semantics = [#tpu.dimension_semantics<parallel>, #tpu.dimension_semantics<parallel>, #tpu.dimension_semantics<arbitrary>], iteration_bounds = array<i64: 1, 1, 1>, scalar_prefetch = 0 : i64, scratch_operands = 1 : i64, tpu.core_type = #tpu.core_type<tc>, window_params = [{transform_indices = @transform_0, window_bounds = array<i64: 32, 64>}, {transform_indices = @transform_1, window_bounds = array<i64: 64, 192>}, {transform_indices = @transform_2, window_bounds = array<i64: 32, 192>}]} {
    %c0_i32 = arith.constant 0 : i32
    %0 = arith.cmpi eq, %arg2, %c0_i32 : i32
    %1 = arith.extui %0 : i1 to i32
    %c0_i32_0 = arith.constant 0 : i32
    %2 = arith.cmpi ne, %1, %c0_i32_0 : i32
    scf.if %2 {
      %cst_10 = arith.constant 0.000000e+00 : f32
      %12 = vector.broadcast %cst_10 : f32 to vector<32x192xf32>
      %c0_11 = arith.constant 0 : index
      %c0_12 = arith.constant 0 : index
      %13 = vector.load %arg6[%c0_11, %c0_12] : memref<32x192xf32, #tpu.memory_space<vmem>>, vector<32x192xf32>
      tpu.vector_store %arg6[%c0_11, %c0_12], %12 {strides = array<i32>} : memref<32x192xf32, #tpu.memory_space<vmem>>, vector<32x192xf32>,
    } else {
    }
    %c0 = arith.constant 0 : index
    %c0_1 = arith.constant 0 : index
    %3 = vector.load %arg6[%c0, %c0_1] : memref<32x192xf32, #tpu.memory_space<vmem>>, vector<32x192xf32>
    %c0_2 = arith.constant 0 : index
    %c0_3 = arith.constant 0 : index
    %4 = vector.load %arg3[%c0_2, %c0_3] : memref<32x64xbf16, #tpu.memory_space<vmem>>, vector<32x64xbf16>
    %c0_4 = arith.constant 0 : index
    %c0_5 = arith.constant 0 : index
    %5 = vector.load %arg4[%c0_4, %c0_5] : memref<64x192xbf16, #tpu.memory_space<vmem>>, vector<64x192xbf16>
    %cst = arith.constant dense<0.000000e+00> : vector<32x192xf32>
    %6 = tpu.matmul %4, %5, %cst {dimension_numbers = #tpu.dot_dimension_numbers<[1], [0], [0], [1], [0, 0, 1, 1], [], []>} : vector<32x64xbf16>, vector<64x192xbf16>, vector<32x192xf32> -> vector<32x192xf32>
    %7 = arith.addf %3, %6 : vector<32x192xf32>
    %c0_6 = arith.constant 0 : index
    %c0_7 = arith.constant 0 : index
    %8 = vector.load %arg6[%c0_6, %c0_7] : memref<32x192xf32, #tpu.memory_space<vmem>>, vector<32x192xf32>
    tpu.vector_store %arg6[%c0_6, %c0_7], %7 {strides = array<i32>} : memref<32x192xf32, #tpu.memory_space<vmem>>, vector<32x192xf32>,
    %c0_i32_8 = arith.constant 0 : i32
    %9 = arith.cmpi eq, %arg2, %c0_i32_8 : i32
    %10 = arith.extui %9 : i1 to i32
    %c0_i32_9 = arith.constant 0 : i32
    %11 = arith.cmpi ne, %10, %c0_i32_9 : i32
    scf.if %11 {
      %c0_10 = arith.constant 0 : index
      %c0_11 = arith.constant 0 : index
      %12 = vector.load %arg6[%c0_10, %c0_11] : memref<32x192xf32, #tpu.memory_space<vmem>>, vector<32x192xf32>
      %13 = arith.truncf %12 : vector<32x192xf32> to vector<32x192xbf16>
      %c0_12 = arith.constant 0 : index
      %c0_13 = arith.constant 0 : index
      %14 = vector.load %arg5[%c0_12, %c0_13] : memref<32x192xbf16, #tpu.memory_space<vmem>>, vector<32x192xbf16>
      tpu.vector_store %arg5[%c0_12, %c0_13], %13 {strides = array<i32>} : memref<32x192xbf16, #tpu.memory_space<vmem>>, vector<32x192xbf16>,
    } else {
    }
    return
  }
  func.func @transform_0(%arg0: i32, %arg1: i32, %arg2: i32) -> (i32, i32) {
    %c0_i32 = arith.constant 0 : i32
    return %arg0, %arg2 : i32, i32
  }
  func.func @transform_1(%arg0: i32, %arg1: i32, %arg2: i32) -> (i32, i32) {
    %c0_i32 = arith.constant 0 : i32
    return %arg2, %arg1 : i32, i32
  }
  func.func @transform_2(%arg0: i32, %arg1: i32, %arg2: i32) -> (i32, i32) {
    %c0_i32 = arith.constant 0 : i32
    return %arg0, %arg1 : i32, i32
  }
}

module attributes {stable_mosaic.version = 11 : i64} {
  func.func @_ln_kernel(%arg0: i32, %arg1: memref<32x64xf32, #tpu.memory_space<vmem>>, %arg2: memref<1x64xf32, #tpu.memory_space<vmem>>, %arg3: memref<1x64xf32, #tpu.memory_space<vmem>>, %arg4: memref<32x64xbf16, #tpu.memory_space<vmem>>) attributes {dimension_semantics = [#tpu.dimension_semantics<parallel>], iteration_bounds = array<i64: 1>, scalar_prefetch = 0 : i64, scratch_operands = 0 : i64, tpu.core_type = #tpu.core_type<tc>, window_params = [{transform_indices = @transform_0, window_bounds = array<i64: 32, 64>}, {pipeline_mode = #tpu.pipeline_mode<synchronous>, transform_indices = @transform_1, window_bounds = array<i64: 1, 64>}, {pipeline_mode = #tpu.pipeline_mode<synchronous>, transform_indices = @transform_2, window_bounds = array<i64: 1, 64>}, {transform_indices = @transform_3, window_bounds = array<i64: 32, 64>}]} {
    %c0 = arith.constant 0 : index
    %c0_0 = arith.constant 0 : index
    %0 = vector.load %arg1[%c0, %c0_0] : memref<32x64xf32, #tpu.memory_space<vmem>>, vector<32x64xf32>
    %cst = arith.constant dense<0.000000e+00> : vector<32xf32>
    %1 = vector.multi_reduction <add>, %0, %cst [1] : vector<32x64xf32> to vector<32xf32>
    %2 = vector.shape_cast %1 : vector<32xf32> to vector<32x1xf32>
    %cst_1 = arith.constant 6.400000e+01 : f32
    %3 = vector.broadcast %cst_1 : f32 to vector<32x1xf32>
    %4 = arith.divf %2, %3 : vector<32x1xf32>
    %5 = vector.broadcast %4 : vector<32x1xf32> to vector<32x64xf32>
    %6 = arith.subf %0, %5 : vector<32x64xf32>
    %7 = arith.mulf %6, %6 : vector<32x64xf32>
    %cst_2 = arith.constant dense<0.000000e+00> : vector<32xf32>
    %8 = vector.multi_reduction <add>, %7, %cst_2 [1] : vector<32x64xf32> to vector<32xf32>
    %9 = vector.shape_cast %8 : vector<32xf32> to vector<32x1xf32>
    %cst_3 = arith.constant 6.400000e+01 : f32
    %10 = vector.broadcast %cst_3 : f32 to vector<32x1xf32>
    %11 = arith.divf %9, %10 : vector<32x1xf32>
    %cst_4 = arith.constant 9.99999974E-6 : f32
    %12 = vector.broadcast %cst_4 : f32 to vector<32x1xf32>
    %13 = arith.addf %11, %12 : vector<32x1xf32>
    %14 = math.rsqrt %13 : vector<32x1xf32>
    %15 = vector.broadcast %14 : vector<32x1xf32> to vector<32x64xf32>
    %16 = arith.mulf %6, %15 : vector<32x64xf32>
    %c0_5 = arith.constant 0 : index
    %c0_6 = arith.constant 0 : index
    %17 = vector.load %arg2[%c0_5, %c0_6] : memref<1x64xf32, #tpu.memory_space<vmem>>, vector<1x64xf32>
    %18 = vector.broadcast %17 : vector<1x64xf32> to vector<32x64xf32>
    %19 = arith.mulf %16, %18 : vector<32x64xf32>
    %c0_7 = arith.constant 0 : index
    %c0_8 = arith.constant 0 : index
    %20 = vector.load %arg3[%c0_7, %c0_8] : memref<1x64xf32, #tpu.memory_space<vmem>>, vector<1x64xf32>
    %21 = vector.broadcast %20 : vector<1x64xf32> to vector<32x64xf32>
    %22 = arith.addf %19, %21 : vector<32x64xf32>
    %23 = arith.truncf %22 : vector<32x64xf32> to vector<32x64xbf16>
    %c0_9 = arith.constant 0 : index
    %c0_10 = arith.constant 0 : index
    %24 = vector.load %arg4[%c0_9, %c0_10] : memref<32x64xbf16, #tpu.memory_space<vmem>>, vector<32x64xbf16>
    tpu.vector_store %arg4[%c0_9, %c0_10], %23 {strides = array<i32>} : memref<32x64xbf16, #tpu.memory_space<vmem>>, vector<32x64xbf16>,
    return
  }
  func.func @transform_0(%arg0: i32) -> (i32, i32) {
    %c0_i32 = arith.constant 0 : i32
    %c0_i32_0 = arith.constant 0 : i32
    return %arg0, %c0_i32 : i32, i32
  }
  func.func @transform_1(%arg0: i32) -> (i32, i32) {
    %c0_i32 = arith.constant 0 : i32
    %c0_i32_0 = arith.constant 0 : i32
    %c0_i32_1 = arith.constant 0 : i32
    return %c0_i32, %c0_i32_0 : i32, i32
  }
  func.func @transform_2(%arg0: i32) -> (i32, i32) {
    %c0_i32 = arith.constant 0 : i32
    %c0_i32_0 = arith.constant 0 : i32
    %c0_i32_1 = arith.constant 0 : i32
    return %c0_i32, %c0_i32_0 : i32, i32
  }
  func.func @transform_3(%arg0: i32) -> (i32, i32) {
    %c0_i32 = arith.constant 0 : i32
    %c0_i32_0 = arith.constant 0 : i32
    return %arg0, %c0_i32 : i32, i32
  }
}

module attributes {stable_mosaic.version = 11 : i64} {
  func.func @_attn_kernel(%arg0: i32, %arg1: memref<8x16x16xbf16, #tpu.memory_space<vmem>>, %arg2: memref<8x16x16xbf16, #tpu.memory_space<vmem>>, %arg3: memref<8x16x16xbf16, #tpu.memory_space<vmem>>, %arg4: memref<8x16x16xbf16, #tpu.memory_space<vmem>>) attributes {dimension_semantics = [#tpu.dimension_semantics<parallel>], iteration_bounds = array<i64: 1>, scalar_prefetch = 0 : i64, scratch_operands = 0 : i64, tpu.core_type = #tpu.core_type<tc>, window_params = [{transform_indices = @transform_0, window_bounds = array<i64: 8, 16, 16>}, {transform_indices = @transform_1, window_bounds = array<i64: 8, 16, 16>}, {transform_indices = @transform_2, window_bounds = array<i64: 8, 16, 16>}, {transform_indices = @transform_3, window_bounds = array<i64: 8, 16, 16>}]} {
    %c0 = arith.constant 0 : index
    %c0_0 = arith.constant 0 : index
    %c0_1 = arith.constant 0 : index
    %0 = vector.load %arg1[%c0, %c0_0, %c0_1] : memref<8x16x16xbf16, #tpu.memory_space<vmem>>, vector<8x16x16xbf16>
    %c0_2 = arith.constant 0 : index
    %c0_3 = arith.constant 0 : index
    %c0_4 = arith.constant 0 : index
    %1 = vector.load %arg2[%c0_2, %c0_3, %c0_4] : memref<8x16x16xbf16, #tpu.memory_space<vmem>>, vector<8x16x16xbf16>
    %c0_5 = arith.constant 0 : index
    %c0_6 = arith.constant 0 : index
    %c0_7 = arith.constant 0 : index
    %2 = vector.load %arg3[%c0_5, %c0_6, %c0_7] : memref<8x16x16xbf16, #tpu.memory_space<vmem>>, vector<8x16x16xbf16>
    "tpu.trace_start"() <{level = 10 : i32, message = "gnd,gmd->gnm"}> : () -> ()
    %cst = arith.constant dense<0.000000e+00> : vector<8x16x16xf32>
    %3 = tpu.matmul %0, %1, %cst {dimension_numbers = #tpu.dot_dimension_numbers<[2], [2], [1], [1], [0, 0, 0, 1, 1, 1], [0], [0]>} : vector<8x16x16xbf16>, vector<8x16x16xbf16>, vector<8x16x16xf32> -> vector<8x16x16xf32>
    "tpu.trace_stop"() : () -> ()
    %cst_8 = arith.constant 2.500000e-01 : f32
    %4 = vector.broadcast %cst_8 : f32 to vector<8x16x16xf32>
    %5 = arith.mulf %3, %4 : vector<8x16x16xf32>
    %cst_9 = arith.constant dense<0xFF800000> : vector<8x16xf32>
    %6 = vector.multi_reduction <maximumf>, %5, %cst_9 [2] : vector<8x16x16xf32> to vector<8x16xf32>
    %7 = vector.shape_cast %6 : vector<8x16xf32> to vector<8x16x1xf32>
    %8 = vector.broadcast %7 : vector<8x16x1xf32> to vector<8x16x16xf32>
    %9 = arith.subf %5, %8 : vector<8x16x16xf32>
    %10 = math.exp %9 : vector<8x16x16xf32>
    %cst_10 = arith.constant dense<0.000000e+00> : vector<8x16xf32>
    %11 = vector.multi_reduction <add>, %10, %cst_10 [2] : vector<8x16x16xf32> to vector<8x16xf32>
    %12 = vector.shape_cast %11 : vector<8x16xf32> to vector<8x16x1xf32>
    %13 = arith.truncf %10 : vector<8x16x16xf32> to vector<8x16x16xbf16>
    "tpu.trace_start"() <{level = 10 : i32, message = "gnm,gmd->gnd"}> : () -> ()
    %cst_11 = arith.constant dense<0.000000e+00> : vector<8x16x16xf32>
    %14 = tpu.matmul %13, %2, %cst_11 {dimension_numbers = #tpu.dot_dimension_numbers<[2], [1], [1], [2], [0, 0, 0, 1, 1, 2], [0], [0]>} : vector<8x16x16xbf16>, vector<8x16x16xbf16>, vector<8x16x16xf32> -> vector<8x16x16xf32>
    "tpu.trace_stop"() : () -> ()
    %15 = tpu.reciprocal %12 {approx = true} : vector<8x16x1xf32> -> vector<8x16x1xf32>
    %16 = vector.broadcast %15 : vector<8x16x1xf32> to vector<8x16x16xf32>
    %17 = arith.mulf %14, %16 : vector<8x16x16xf32>
    %18 = arith.truncf %17 : vector<8x16x16xf32> to vector<8x16x16xbf16>
    %c0_12 = arith.constant 0 : index
    %c0_13 = arith.constant 0 : index
    %c0_14 = arith.constant 0 : index
    %19 = vector.load %arg4[%c0_12, %c0_13, %c0_14] : memref<8x16x16xbf16, #tpu.memory_space<vmem>>, vector<8x16x16xbf16>
    tpu.vector_store %arg4[%c0_12, %c0_13, %c0_14], %18 {strides = array<i32>} : memref<8x16x16xbf16, #tpu.memory_space<vmem>>, vector<8x16x16xbf16>,
    return
  }
  func.func @transform_0(%arg0: i32) -> (i32, i32, i32) {
    %c0_i32 = arith.constant 0 : i32
    %c0_i32_0 = arith.constant 0 : i32
    %c0_i32_1 = arith.constant 0 : i32
    return %arg0, %c0_i32, %c0_i32_0 : i32, i32, i32
  }
  func.func @transform_1(%arg0: i32) -> (i32, i32, i32) {
    %c0_i32 = arith.constant 0 : i32
    %c0_i32_0 = arith.constant 0 : i32
    %c0_i32_1 = arith.constant 0 : i32
    return %arg0, %c0_i32, %c0_i32_0 : i32, i32, i32
  }
  func.func @transform_2(%arg0: i32) -> (i32, i32, i32) {
    %c0_i32 = arith.constant 0 : i32
    %c0_i32_0 = arith.constant 0 : i32
    %c0_i32_1 = arith.constant 0 : i32
    return %arg0, %c0_i32, %c0_i32_0 : i32, i32, i32
  }
  func.func @transform_3(%arg0: i32) -> (i32, i32, i32) {
    %c0_i32 = arith.constant 0 : i32
    %c0_i32_0 = arith.constant 0 : i32
    %c0_i32_1 = arith.constant 0 : i32
    return %arg0, %c0_i32, %c0_i32_0 : i32, i32, i32
  }
}

module attributes {stable_mosaic.version = 11 : i64} {
  func.func @_mm_kernel(%arg0: i32, %arg1: i32, %arg2: i32, %arg3: memref<32x64xbf16, #tpu.memory_space<vmem>>, %arg4: memref<64x128xbf16, #tpu.memory_space<vmem>>, %arg5: memref<1x128xf32, #tpu.memory_space<vmem>>, %arg6: memref<32x128xbf16, #tpu.memory_space<vmem>>, %arg7: memref<32x128xf32, #tpu.memory_space<vmem>>) attributes {dimension_semantics = [#tpu.dimension_semantics<parallel>, #tpu.dimension_semantics<parallel>, #tpu.dimension_semantics<arbitrary>], iteration_bounds = array<i64: 1, 1, 1>, scalar_prefetch = 0 : i64, scratch_operands = 1 : i64, tpu.core_type = #tpu.core_type<tc>, window_params = [{transform_indices = @transform_0, window_bounds = array<i64: 32, 64>}, {transform_indices = @transform_1, window_bounds = array<i64: 64, 128>}, {transform_indices = @transform_2, window_bounds = array<i64: 1, 128>}, {transform_indices = @transform_3, window_bounds = array<i64: 32, 128>}]} {
    %c0_i32 = arith.constant 0 : i32
    %0 = arith.cmpi eq, %arg2, %c0_i32 : i32
    %1 = arith.extui %0 : i1 to i32
    %c0_i32_0 = arith.constant 0 : i32
    %2 = arith.cmpi ne, %1, %c0_i32_0 : i32
    scf.if %2 {
      %cst_10 = arith.constant 0.000000e+00 : f32
      %12 = vector.broadcast %cst_10 : f32 to vector<32x128xf32>
      %c0_11 = arith.constant 0 : index
      %c0_12 = arith.constant 0 : index
      %13 = vector.load %arg7[%c0_11, %c0_12] : memref<32x128xf32, #tpu.memory_space<vmem>>, vector<32x128xf32>
      tpu.vector_store %arg7[%c0_11, %c0_12], %12 {strides = array<i32>} : memref<32x128xf32, #tpu.memory_space<vmem>>, vector<32x128xf32>,
    } else {
    }
    %c0 = arith.constant 0 : index
    %c0_1 = arith.constant 0 : index
    %3 = vector.load %arg7[%c0, %c0_1] : memref<32x128xf32, #tpu.memory_space<vmem>>, vector<32x128xf32>
    %c0_2 = arith.constant 0 : index
    %c0_3 = arith.constant 0 : index
    %4 = vector.load %arg3[%c0_2, %c0_3] : memref<32x64xbf16, #tpu.memory_space<vmem>>, vector<32x64xbf16>
    %c0_4 = arith.constant 0 : index
    %c0_5 = arith.constant 0 : index
    %5 = vector.load %arg4[%c0_4, %c0_5] : memref<64x128xbf16, #tpu.memory_space<vmem>>, vector<64x128xbf16>
    %cst = arith.constant dense<0.000000e+00> : vector<32x128xf32>
    %6 = tpu.matmul %4, %5, %cst {dimension_numbers = #tpu.dot_dimension_numbers<[1], [0], [0], [1], [0, 0, 1, 1], [], []>} : vector<32x64xbf16>, vector<64x128xbf16>, vector<32x128xf32> -> vector<32x128xf32>
    %7 = arith.addf %3, %6 : vector<32x128xf32>
    %c0_6 = arith.constant 0 : index
    %c0_7 = arith.constant 0 : index
    %8 = vector.load %arg7[%c0_6, %c0_7] : memref<32x128xf32, #tpu.memory_space<vmem>>, vector<32x128xf32>
    tpu.vector_store %arg7[%c0_6, %c0_7], %7 {strides = array<i32>} : memref<32x128xf32, #tpu.memory_space<vmem>>, vector<32x128xf32>,
    %c0_i32_8 = arith.constant 0 : i32
    %9 = arith.cmpi eq, %arg2, %c0_i32_8 : i32
    %10 = arith.extui %9 : i1 to i32
    %c0_i32_9 = arith.constant 0 : i32
    %11 = arith.cmpi ne, %10, %c0_i32_9 : i32
    scf.if %11 {
      %c0_10 = arith.constant 0 : index
      %c0_11 = arith.constant 0 : index
      %12 = vector.load %arg7[%c0_10, %c0_11] : memref<32x128xf32, #tpu.memory_space<vmem>>, vector<32x128xf32>
      %c0_12 = arith.constant 0 : index
      %c0_13 = arith.constant 0 : index
      %13 = vector.load %arg5[%c0_12, %c0_13] : memref<1x128xf32, #tpu.memory_space<vmem>>, vector<1x128xf32>
      %14 = vector.broadcast %13 : vector<1x128xf32> to vector<32x128xf32>
      %15 = arith.addf %12, %14 : vector<32x128xf32>
      %cst_14 = arith.constant 5.000000e-01 : f32
      %16 = vector.broadcast %cst_14 : f32 to vector<32x128xf32>
      %17 = arith.mulf %16, %15 : vector<32x128xf32>
      %cst_15 = arith.constant 4.471500e-02 : f32
      %18 = vector.broadcast %cst_15 : f32 to vector<32x128xf32>
      %19 = arith.mulf %18, %15 : vector<32x128xf32>
      %20 = arith.mulf %19, %15 : vector<32x128xf32>
      %21 = arith.mulf %20, %15 : vector<32x128xf32>
      %22 = arith.addf %15, %21 : vector<32x128xf32>
      %cst_16 = arith.constant 0.797884583 : f32
      %23 = vector.broadcast %cst_16 : f32 to vector<32x128xf32>
      %24 = arith.mulf %23, %22 : vector<32x128xf32>
      %25 = math.tanh %24 : vector<32x128xf32>
      %cst_17 = arith.constant 1.000000e+00 : f32
      %26 = vector.broadcast %cst_17 : f32 to vector<32x128xf32>
      %27 = arith.addf %26, %25 : vector<32x128xf32>
      %28 = arith.mulf %17, %27 : vector<32x128xf32>
      %29 = arith.truncf %28 : vector<32x128xf32> to vector<32x128xbf16>
      %c0_18 = arith.constant 0 : index
      %c0_19 = arith.constant 0 : index
      %30 = vector.load %arg6[%c0_18, %c0_19] : memref<32x128xbf16, #tpu.memory_space<vmem>>, vector<32x128xbf16>
      tpu.vector_store %arg6[%c0_18, %c0_19], %29 {strides = array<i32>} : memref<32x128xbf16, #tpu.memory_space<vmem>>, vector<32x128xbf16>,
    } else {
    }
    return
  }
  func.func @transform_0(%arg0: i32, %arg1: i32, %arg2: i32) -> (i32, i32) {
    %c0_i32 = arith.constant 0 : i32
    return %arg0, %arg2 : i32, i32
  }
  func.func @transform_1(%arg0: i32, %arg1: i32, %arg2: i32) -> (i32, i32) {
    %c0_i32 = arith.constant 0 : i32
    return %arg2, %arg1 : i32, i32
  }
  func.func @transform_2(%arg0: i32, %arg1: i32, %arg2: i32) -> (i32, i32) {
    %c0_i32 = arith.constant 0 : i32
    %c0_i32_0 = arith.constant 0 : i32
    return %c0_i32, %arg1 : i32, i32
  }
  func.func @transform_3(%arg0: i32, %arg1: i32, %arg2: i32) -> (i32, i32) {
    %c0_i32 = arith.constant 0 : i32
    return %arg0, %arg1 : i32, i32
  }
}

module attributes {stable_mosaic.version = 11 : i64} {
  func.func @_mm_kernel(%arg0: i32, %arg1: i32, %arg2: i32, %arg3: memref<32x64xbf16, #tpu.memory_space<vmem>>, %arg4: memref<64x64xbf16, #tpu.memory_space<vmem>>, %arg5: memref<1x64xf32, #tpu.memory_space<vmem>>, %arg6: memref<32x64xf32, #tpu.memory_space<vmem>>, %arg7: memref<1x64xf32, #tpu.memory_space<vmem>>, %arg8: memref<1x64xf32, #tpu.memory_space<vmem>>, %arg9: memref<32x64xf32, #tpu.memory_space<vmem>>, %arg10: memref<32x64xbf16, #tpu.memory_space<vmem>>, %arg11: memref<32x64xf32, #tpu.memory_space<vmem>>) attributes {dimension_semantics = [#tpu.dimension_semantics<parallel>, #tpu.dimension_semantics<parallel>, #tpu.dimension_semantics<arbitrary>], iteration_bounds = array<i64: 1, 1, 1>, scalar_prefetch = 0 : i64, scratch_operands = 1 : i64, tpu.core_type = #tpu.core_type<tc>, window_params = [{transform_indices = @transform_0, window_bounds = array<i64: 32, 64>}, {transform_indices = @transform_1, window_bounds = array<i64: 64, 64>}, {transform_indices = @transform_2, window_bounds = array<i64: 1, 64>}, {transform_indices = @transform_3, window_bounds = array<i64: 32, 64>}, {transform_indices = @transform_4, window_bounds = array<i64: 1, 64>}, {transform_indices = @transform_5, window_bounds = array<i64: 1, 64>}, {transform_indices = @transform_6, window_bounds = array<i64: 32, 64>}, {transform_indices = @transform_7, window_bounds = array<i64: 32, 64>}]} {
    %c0_i32 = arith.constant 0 : i32
    %0 = arith.cmpi eq, %arg2, %c0_i32 : i32
    %1 = arith.extui %0 : i1 to i32
    %c0_i32_0 = arith.constant 0 : i32
    %2 = arith.cmpi ne, %1, %c0_i32_0 : i32
    scf.if %2 {
      %cst_10 = arith.constant 0.000000e+00 : f32
      %12 = vector.broadcast %cst_10 : f32 to vector<32x64xf32>
      %c0_11 = arith.constant 0 : index
      %c0_12 = arith.constant 0 : index
      %13 = vector.load %arg11[%c0_11, %c0_12] : memref<32x64xf32, #tpu.memory_space<vmem>>, vector<32x64xf32>
      tpu.vector_store %arg11[%c0_11, %c0_12], %12 {strides = array<i32>} : memref<32x64xf32, #tpu.memory_space<vmem>>, vector<32x64xf32>,
    } else {
    }
    %c0 = arith.constant 0 : index
    %c0_1 = arith.constant 0 : index
    %3 = vector.load %arg11[%c0, %c0_1] : memref<32x64xf32, #tpu.memory_space<vmem>>, vector<32x64xf32>
    %c0_2 = arith.constant 0 : index
    %c0_3 = arith.constant 0 : index
    %4 = vector.load %arg3[%c0_2, %c0_3] : memref<32x64xbf16, #tpu.memory_space<vmem>>, vector<32x64xbf16>
    %c0_4 = arith.constant 0 : index
    %c0_5 = arith.constant 0 : index
    %5 = vector.load %arg4[%c0_4, %c0_5] : memref<64x64xbf16, #tpu.memory_space<vmem>>, vector<64x64xbf16>
    %cst = arith.constant dense<0.000000e+00> : vector<32x64xf32>
    %6 = tpu.matmul %4, %5, %cst {dimension_numbers = #tpu.dot_dimension_numbers<[1], [0], [0], [1], [0, 0, 1, 1], [], []>} : vector<32x64xbf16>, vector<64x64xbf16>, vector<32x64xf32> -> vector<32x64xf32>
    %7 = arith.addf %3, %6 : vector<32x64xf32>
    %c0_6 = arith.constant 0 : index
    %c0_7 = arith.constant 0 : index
    %8 = vector.load %arg11[%c0_6, %c0_7] : memref<32x64xf32, #tpu.memory_space<vmem>>, vector<32x64xf32>
    tpu.vector_store %arg11[%c0_6, %c0_7], %7 {strides = array<i32>} : memref<32x64xf32, #tpu.memory_space<vmem>>, vector<32x64xf32>,
    %c0_i32_8 = arith.constant 0 : i32
    %9 = arith.cmpi eq, %arg2, %c0_i32_8 : i32
    %10 = arith.extui %9 : i1 to i32
    %c0_i32_9 = arith.constant 0 : i32
    %11 = arith.cmpi ne, %10, %c0_i32_9 : i32
    scf.if %11 {
      %c0_10 = arith.constant 0 : index
      %c0_11 = arith.constant 0 : index
      %12 = vector.load %arg11[%c0_10, %c0_11] : memref<32x64xf32, #tpu.memory_space<vmem>>, vector<32x64xf32>
      %c0_12 = arith.constant 0 : index
      %c0_13 = arith.constant 0 : index
      %13 = vector.load %arg5[%c0_12, %c0_13] : memref<1x64xf32, #tpu.memory_space<vmem>>, vector<1x64xf32>
      %14 = vector.broadcast %13 : vector<1x64xf32> to vector<32x64xf32>
      %15 = arith.addf %12, %14 : vector<32x64xf32>
      %c0_14 = arith.constant 0 : index
      %c0_15 = arith.constant 0 : index
      %16 = vector.load %arg6[%c0_14, %c0_15] : memref<32x64xf32, #tpu.memory_space<vmem>>, vector<32x64xf32>
      %17 = arith.addf %15, %16 : vector<32x64xf32>
      %c0_16 = arith.constant 0 : index
      %c0_17 = arith.constant 0 : index
      %18 = vector.load %arg9[%c0_16, %c0_17] : memref<32x64xf32, #tpu.memory_space<vmem>>, vector<32x64xf32>
      tpu.vector_store %arg9[%c0_16, %c0_17], %17 {strides = array<i32>} : memref<32x64xf32, #tpu.memory_space<vmem>>, vector<32x64xf32>,
      %cst_18 = arith.constant dense<0.000000e+00> : vector<32xf32>
      %19 = vector.multi_reduction <add>, %17, %cst_18 [1] : vector<32x64xf32> to vector<32xf32>
      %20 = vector.shape_cast %19 : vector<32xf32> to vector<32x1xf32>
      %cst_19 = arith.constant 1.562500e-02 : f32
      %21 = vector.broadcast %cst_19 : f32 to vector<32x1xf32>
      %22 = arith.mulf %20, %21 : vector<32x1xf32>
      %23 = vector.broadcast %22 : vector<32x1xf32> to vector<32x64xf32>
      %24 = arith.subf %17, %23 : vector<32x64xf32>
      %25 = arith.mulf %24, %24 : vector<32x64xf32>
      %cst_20 = arith.constant dense<0.000000e+00> : vector<32xf32>
      %26 = vector.multi_reduction <add>, %25, %cst_20 [1] : vector<32x64xf32> to vector<32xf32>
      %27 = vector.shape_cast %26 : vector<32xf32> to vector<32x1xf32>
      %cst_21 = arith.constant 1.562500e-02 : f32
      %28 = vector.broadcast %cst_21 : f32 to vector<32x1xf32>
      %29 = arith.mulf %27, %28 : vector<32x1xf32>
      %cst_22 = arith.constant 9.99999974E-6 : f32
      %30 = vector.broadcast %cst_22 : f32 to vector<32x1xf32>
      %31 = arith.addf %29, %30 : vector<32x1xf32>
      %32 = math.rsqrt %31 : vector<32x1xf32>
      %33 = vector.broadcast %32 : vector<32x1xf32> to vector<32x64xf32>
      %34 = arith.mulf %24, %33 : vector<32x64xf32>
      %c0_23 = arith.constant 0 : index
      %c0_24 = arith.constant 0 : index
      %35 = vector.load %arg7[%c0_23, %c0_24] : memref<1x64xf32, #tpu.memory_space<vmem>>, vector<1x64xf32>
      %36 = vector.broadcast %35 : vector<1x64xf32> to vector<32x64xf32>
      %37 = arith.mulf %34, %36 : vector<32x64xf32>
      %c0_25 = arith.constant 0 : index
      %c0_26 = arith.constant 0 : index
      %38 = vector.load %arg8[%c0_25, %c0_26] : memref<1x64xf32, #tpu.memory_space<vmem>>, vector<1x64xf32>
      %39 = vector.broadcast %38 : vector<1x64xf32> to vector<32x64xf32>
      %40 = arith.addf %37, %39 : vector<32x64xf32>
      %41 = arith.truncf %40 : vector<32x64xf32> to vector<32x64xbf16>
      %c0_27 = arith.constant 0 : index
      %c0_28 = arith.constant 0 : index
      %42 = vector.load %arg10[%c0_27, %c0_28] : memref<32x64xbf16, #tpu.memory_space<vmem>>, vector<32x64xbf16>
      tpu.vector_store %arg10[%c0_27, %c0_28], %41 {strides = array<i32>} : memref<32x64xbf16, #tpu.memory_space<vmem>>, vector<32x64xbf16>,
    } else {
    }
    return
  }
  func.func @transform_0(%arg0: i32, %arg1: i32, %arg2: i32) -> (i32, i32) {
    %c0_i32 = arith.constant 0 : i32
    return %arg0, %arg2 : i32, i32
  }
  func.func @transform_1(%arg0: i32, %arg1: i32, %arg2: i32) -> (i32, i32) {
    %c0_i32 = arith.constant 0 : i32
    return %arg2, %arg1 : i32, i32
  }
  func.func @transform_2(%arg0: i32, %arg1: i32, %arg2: i32) -> (i32, i32) {
    %c0_i32 = arith.constant 0 : i32
    %c0_i32_0 = arith.constant 0 : i32
    return %c0_i32, %arg1 : i32, i32
  }
  func.func @transform_3(%arg0: i32, %arg1: i32, %arg2: i32) -> (i32, i32) {
    %c0_i32 = arith.constant 0 : i32
    return %arg0, %arg1 : i32, i32
  }
  func.func @transform_4(%arg0: i32, %arg1: i32, %arg2: i32) -> (i32, i32) {
    %c0_i32 = arith.constant 0 : i32
    %c0_i32_0 = arith.constant 0 : i32
    return %c0_i32, %arg1 : i32, i32
  }
  func.func @transform_5(%arg0: i32, %arg1: i32, %arg2: i32) -> (i32, i32) {
    %c0_i32 = arith.constant 0 : i32
    %c0_i32_0 = arith.constant 0 : i32
    return %c0_i32, %arg1 : i32, i32
  }
  func.func @transform_6(%arg0: i32, %arg1: i32, %arg2: i32) -> (i32, i32) {
    %c0_i32 = arith.constant 0 : i32
    return %arg0, %arg1 : i32, i32
  }
  func.func @transform_7(%arg0: i32, %arg1: i32, %arg2: i32) -> (i32, i32) {
    %c0_i32 = arith.constant 0 : i32
    return %arg0, %arg1 : i32, i32
  }
}

module attributes {stable_mosaic.version = 11 : i64} {
  func.func @_mm_kernel(%arg0: i32, %arg1: i32, %arg2: i32, %arg3: memref<32x128xbf16, #tpu.memory_space<vmem>>, %arg4: memref<128x64xbf16, #tpu.memory_space<vmem>>, %arg5: memref<1x64xf32, #tpu.memory_space<vmem>>, %arg6: memref<32x64xf32, #tpu.memory_space<vmem>>, %arg7: memref<1x64xf32, #tpu.memory_space<vmem>>, %arg8: memref<1x64xf32, #tpu.memory_space<vmem>>, %arg9: memref<32x64xf32, #tpu.memory_space<vmem>>, %arg10: memref<32x64xbf16, #tpu.memory_space<vmem>>, %arg11: memref<32x64xf32, #tpu.memory_space<vmem>>) attributes {dimension_semantics = [#tpu.dimension_semantics<parallel>, #tpu.dimension_semantics<parallel>, #tpu.dimension_semantics<arbitrary>], iteration_bounds = array<i64: 1, 1, 1>, scalar_prefetch = 0 : i64, scratch_operands = 1 : i64, tpu.core_type = #tpu.core_type<tc>, window_params = [{transform_indices = @transform_0, window_bounds = array<i64: 32, 128>}, {transform_indices = @transform_1, window_bounds = array<i64: 128, 64>}, {transform_indices = @transform_2, window_bounds = array<i64: 1, 64>}, {transform_indices = @transform_3, window_bounds = array<i64: 32, 64>}, {transform_indices = @transform_4, window_bounds = array<i64: 1, 64>}, {transform_indices = @transform_5, window_bounds = array<i64: 1, 64>}, {transform_indices = @transform_6, window_bounds = array<i64: 32, 64>}, {transform_indices = @transform_7, window_bounds = array<i64: 32, 64>}]} {
    %c0_i32 = arith.constant 0 : i32
    %0 = arith.cmpi eq, %arg2, %c0_i32 : i32
    %1 = arith.extui %0 : i1 to i32
    %c0_i32_0 = arith.constant 0 : i32
    %2 = arith.cmpi ne, %1, %c0_i32_0 : i32
    scf.if %2 {
      %cst_10 = arith.constant 0.000000e+00 : f32
      %12 = vector.broadcast %cst_10 : f32 to vector<32x64xf32>
      %c0_11 = arith.constant 0 : index
      %c0_12 = arith.constant 0 : index
      %13 = vector.load %arg11[%c0_11, %c0_12] : memref<32x64xf32, #tpu.memory_space<vmem>>, vector<32x64xf32>
      tpu.vector_store %arg11[%c0_11, %c0_12], %12 {strides = array<i32>} : memref<32x64xf32, #tpu.memory_space<vmem>>, vector<32x64xf32>,
    } else {
    }
    %c0 = arith.constant 0 : index
    %c0_1 = arith.constant 0 : index
    %3 = vector.load %arg11[%c0, %c0_1] : memref<32x64xf32, #tpu.memory_space<vmem>>, vector<32x64xf32>
    %c0_2 = arith.constant 0 : index
    %c0_3 = arith.constant 0 : index
    %4 = vector.load %arg3[%c0_2, %c0_3] : memref<32x128xbf16, #tpu.memory_space<vmem>>, vector<32x128xbf16>
    %c0_4 = arith.constant 0 : index
    %c0_5 = arith.constant 0 : index
    %5 = vector.load %arg4[%c0_4, %c0_5] : memref<128x64xbf16, #tpu.memory_space<vmem>>, vector<128x64xbf16>
    %cst = arith.constant dense<0.000000e+00> : vector<32x64xf32>
    %6 = tpu.matmul %4, %5, %cst {dimension_numbers = #tpu.dot_dimension_numbers<[1], [0], [0], [1], [0, 0, 1, 1], [], []>} : vector<32x128xbf16>, vector<128x64xbf16>, vector<32x64xf32> -> vector<32x64xf32>
    %7 = arith.addf %3, %6 : vector<32x64xf32>
    %c0_6 = arith.constant 0 : index
    %c0_7 = arith.constant 0 : index
    %8 = vector.load %arg11[%c0_6, %c0_7] : memref<32x64xf32, #tpu.memory_space<vmem>>, vector<32x64xf32>
    tpu.vector_store %arg11[%c0_6, %c0_7], %7 {strides = array<i32>} : memref<32x64xf32, #tpu.memory_space<vmem>>, vector<32x64xf32>,
    %c0_i32_8 = arith.constant 0 : i32
    %9 = arith.cmpi eq, %arg2, %c0_i32_8 : i32
    %10 = arith.extui %9 : i1 to i32
    %c0_i32_9 = arith.constant 0 : i32
    %11 = arith.cmpi ne, %10, %c0_i32_9 : i32
    scf.if %11 {
      %c0_10 = arith.constant 0 : index
      %c0_11 = arith.constant 0 : index
      %12 = vector.load %arg11[%c0_10, %c0_11] : memref<32x64xf32, #tpu.memory_space<vmem>>, vector<32x64xf32>
      %c0_12 = arith.constant 0 : index
      %c0_13 = arith.constant 0 : index
      %13 = vector.load %arg5[%c0_12, %c0_13] : memref<1x64xf32, #tpu.memory_space<vmem>>, vector<1x64xf32>
      %14 = vector.broadcast %13 : vector<1x64xf32> to vector<32x64xf32>
      %15 = arith.addf %12, %14 : vector<32x64xf32>
      %c0_14 = arith.constant 0 : index
      %c0_15 = arith.constant 0 : index
      %16 = vector.load %arg6[%c0_14, %c0_15] : memref<32x64xf32, #tpu.memory_space<vmem>>, vector<32x64xf32>
      %17 = arith.addf %15, %16 : vector<32x64xf32>
      %c0_16 = arith.constant 0 : index
      %c0_17 = arith.constant 0 : index
      %18 = vector.load %arg9[%c0_16, %c0_17] : memref<32x64xf32, #tpu.memory_space<vmem>>, vector<32x64xf32>
      tpu.vector_store %arg9[%c0_16, %c0_17], %17 {strides = array<i32>} : memref<32x64xf32, #tpu.memory_space<vmem>>, vector<32x64xf32>,
      %cst_18 = arith.constant dense<0.000000e+00> : vector<32xf32>
      %19 = vector.multi_reduction <add>, %17, %cst_18 [1] : vector<32x64xf32> to vector<32xf32>
      %20 = vector.shape_cast %19 : vector<32xf32> to vector<32x1xf32>
      %cst_19 = arith.constant 1.562500e-02 : f32
      %21 = vector.broadcast %cst_19 : f32 to vector<32x1xf32>
      %22 = arith.mulf %20, %21 : vector<32x1xf32>
      %23 = vector.broadcast %22 : vector<32x1xf32> to vector<32x64xf32>
      %24 = arith.subf %17, %23 : vector<32x64xf32>
      %25 = arith.mulf %24, %24 : vector<32x64xf32>
      %cst_20 = arith.constant dense<0.000000e+00> : vector<32xf32>
      %26 = vector.multi_reduction <add>, %25, %cst_20 [1] : vector<32x64xf32> to vector<32xf32>
      %27 = vector.shape_cast %26 : vector<32xf32> to vector<32x1xf32>
      %cst_21 = arith.constant 1.562500e-02 : f32
      %28 = vector.broadcast %cst_21 : f32 to vector<32x1xf32>
      %29 = arith.mulf %27, %28 : vector<32x1xf32>
      %cst_22 = arith.constant 9.99999974E-6 : f32
      %30 = vector.broadcast %cst_22 : f32 to vector<32x1xf32>
      %31 = arith.addf %29, %30 : vector<32x1xf32>
      %32 = math.rsqrt %31 : vector<32x1xf32>
      %33 = vector.broadcast %32 : vector<32x1xf32> to vector<32x64xf32>
      %34 = arith.mulf %24, %33 : vector<32x64xf32>
      %c0_23 = arith.constant 0 : index
      %c0_24 = arith.constant 0 : index
      %35 = vector.load %arg7[%c0_23, %c0_24] : memref<1x64xf32, #tpu.memory_space<vmem>>, vector<1x64xf32>
      %36 = vector.broadcast %35 : vector<1x64xf32> to vector<32x64xf32>
      %37 = arith.mulf %34, %36 : vector<32x64xf32>
      %c0_25 = arith.constant 0 : index
      %c0_26 = arith.constant 0 : index
      %38 = vector.load %arg8[%c0_25, %c0_26] : memref<1x64xf32, #tpu.memory_space<vmem>>, vector<1x64xf32>
      %39 = vector.broadcast %38 : vector<1x64xf32> to vector<32x64xf32>
      %40 = arith.addf %37, %39 : vector<32x64xf32>
      %41 = arith.truncf %40 : vector<32x64xf32> to vector<32x64xbf16>
      %c0_27 = arith.constant 0 : index
      %c0_28 = arith.constant 0 : index
      %42 = vector.load %arg10[%c0_27, %c0_28] : memref<32x64xbf16, #tpu.memory_space<vmem>>, vector<32x64xbf16>
      tpu.vector_store %arg10[%c0_27, %c0_28], %41 {strides = array<i32>} : memref<32x64xbf16, #tpu.memory_space<vmem>>, vector<32x64xbf16>,
    } else {
    }
    return
  }
  func.func @transform_0(%arg0: i32, %arg1: i32, %arg2: i32) -> (i32, i32) {
    %c0_i32 = arith.constant 0 : i32
    return %arg0, %arg2 : i32, i32
  }
  func.func @transform_1(%arg0: i32, %arg1: i32, %arg2: i32) -> (i32, i32) {
    %c0_i32 = arith.constant 0 : i32
    return %arg2, %arg1 : i32, i32
  }
  func.func @transform_2(%arg0: i32, %arg1: i32, %arg2: i32) -> (i32, i32) {
    %c0_i32 = arith.constant 0 : i32
    %c0_i32_0 = arith.constant 0 : i32
    return %c0_i32, %arg1 : i32, i32
  }
  func.func @transform_3(%arg0: i32, %arg1: i32, %arg2: i32) -> (i32, i32) {
    %c0_i32 = arith.constant 0 : i32
    return %arg0, %arg1 : i32, i32
  }
  func.func @transform_4(%arg0: i32, %arg1: i32, %arg2: i32) -> (i32, i32) {
    %c0_i32 = arith.constant 0 : i32
    %c0_i32_0 = arith.constant 0 : i32
    return %c0_i32, %arg1 : i32, i32
  }
  func.func @transform_5(%arg0: i32, %arg1: i32, %arg2: i32) -> (i32, i32) {
    %c0_i32 = arith.constant 0 : i32
    %c0_i32_0 = arith.constant 0 : i32
    return %c0_i32, %arg1 : i32, i32
  }
  func.func @transform_6(%arg0: i32, %arg1: i32, %arg2: i32) -> (i32, i32) {
    %c0_i32 = arith.constant 0 : i32
    return %arg0, %arg1 : i32, i32
  }
  func.func @transform_7(%arg0: i32, %arg1: i32, %arg2: i32) -> (i32, i32) {
    %c0_i32 = arith.constant 0 : i32
    return %arg0, %arg1 : i32, i32
  }
}

module attributes {stable_mosaic.version = 11 : i64} {
  func.func @_mm_kernel(%arg0: i32, %arg1: i32, %arg2: i32, %arg3: memref<32x128xbf16, #tpu.memory_space<vmem>>, %arg4: memref<128x64xbf16, #tpu.memory_space<vmem>>, %arg5: memref<1x64xf32, #tpu.memory_space<vmem>>, %arg6: memref<32x64xf32, #tpu.memory_space<vmem>>, %arg7: memref<32x64xf32, #tpu.memory_space<vmem>>, %arg8: memref<32x64xf32, #tpu.memory_space<vmem>>) attributes {dimension_semantics = [#tpu.dimension_semantics<parallel>, #tpu.dimension_semantics<parallel>, #tpu.dimension_semantics<arbitrary>], iteration_bounds = array<i64: 1, 1, 1>, scalar_prefetch = 0 : i64, scratch_operands = 1 : i64, tpu.core_type = #tpu.core_type<tc>, window_params = [{transform_indices = @transform_0, window_bounds = array<i64: 32, 128>}, {transform_indices = @transform_1, window_bounds = array<i64: 128, 64>}, {transform_indices = @transform_2, window_bounds = array<i64: 1, 64>}, {transform_indices = @transform_3, window_bounds = array<i64: 32, 64>}, {transform_indices = @transform_4, window_bounds = array<i64: 32, 64>}]} {
    %c0_i32 = arith.constant 0 : i32
    %0 = arith.cmpi eq, %arg2, %c0_i32 : i32
    %1 = arith.extui %0 : i1 to i32
    %c0_i32_0 = arith.constant 0 : i32
    %2 = arith.cmpi ne, %1, %c0_i32_0 : i32
    scf.if %2 {
      %cst_10 = arith.constant 0.000000e+00 : f32
      %12 = vector.broadcast %cst_10 : f32 to vector<32x64xf32>
      %c0_11 = arith.constant 0 : index
      %c0_12 = arith.constant 0 : index
      %13 = vector.load %arg8[%c0_11, %c0_12] : memref<32x64xf32, #tpu.memory_space<vmem>>, vector<32x64xf32>
      tpu.vector_store %arg8[%c0_11, %c0_12], %12 {strides = array<i32>} : memref<32x64xf32, #tpu.memory_space<vmem>>, vector<32x64xf32>,
    } else {
    }
    %c0 = arith.constant 0 : index
    %c0_1 = arith.constant 0 : index
    %3 = vector.load %arg8[%c0, %c0_1] : memref<32x64xf32, #tpu.memory_space<vmem>>, vector<32x64xf32>
    %c0_2 = arith.constant 0 : index
    %c0_3 = arith.constant 0 : index
    %4 = vector.load %arg3[%c0_2, %c0_3] : memref<32x128xbf16, #tpu.memory_space<vmem>>, vector<32x128xbf16>
    %c0_4 = arith.constant 0 : index
    %c0_5 = arith.constant 0 : index
    %5 = vector.load %arg4[%c0_4, %c0_5] : memref<128x64xbf16, #tpu.memory_space<vmem>>, vector<128x64xbf16>
    %cst = arith.constant dense<0.000000e+00> : vector<32x64xf32>
    %6 = tpu.matmul %4, %5, %cst {dimension_numbers = #tpu.dot_dimension_numbers<[1], [0], [0], [1], [0, 0, 1, 1], [], []>} : vector<32x128xbf16>, vector<128x64xbf16>, vector<32x64xf32> -> vector<32x64xf32>
    %7 = arith.addf %3, %6 : vector<32x64xf32>
    %c0_6 = arith.constant 0 : index
    %c0_7 = arith.constant 0 : index
    %8 = vector.load %arg8[%c0_6, %c0_7] : memref<32x64xf32, #tpu.memory_space<vmem>>, vector<32x64xf32>
    tpu.vector_store %arg8[%c0_6, %c0_7], %7 {strides = array<i32>} : memref<32x64xf32, #tpu.memory_space<vmem>>, vector<32x64xf32>,
    %c0_i32_8 = arith.constant 0 : i32
    %9 = arith.cmpi eq, %arg2, %c0_i32_8 : i32
    %10 = arith.extui %9 : i1 to i32
    %c0_i32_9 = arith.constant 0 : i32
    %11 = arith.cmpi ne, %10, %c0_i32_9 : i32
    scf.if %11 {
      %c0_10 = arith.constant 0 : index
      %c0_11 = arith.constant 0 : index
      %12 = vector.load %arg8[%c0_10, %c0_11] : memref<32x64xf32, #tpu.memory_space<vmem>>, vector<32x64xf32>
      %c0_12 = arith.constant 0 : index
      %c0_13 = arith.constant 0 : index
      %13 = vector.load %arg5[%c0_12, %c0_13] : memref<1x64xf32, #tpu.memory_space<vmem>>, vector<1x64xf32>
      %14 = vector.broadcast %13 : vector<1x64xf32> to vector<32x64xf32>
      %15 = arith.addf %12, %14 : vector<32x64xf32>
      %c0_14 = arith.constant 0 : index
      %c0_15 = arith.constant 0 : index
      %16 = vector.load %arg6[%c0_14, %c0_15] : memref<32x64xf32, #tpu.memory_space<vmem>>, vector<32x64xf32>
      %17 = arith.addf %15, %16 : vector<32x64xf32>
      %c0_16 = arith.constant 0 : index
      %c0_17 = arith.constant 0 : index
      %18 = vector.load %arg7[%c0_16, %c0_17] : memref<32x64xf32, #tpu.memory_space<vmem>>, vector<32x64xf32>
      tpu.vector_store %arg7[%c0_16, %c0_17], %17 {strides = array<i32>} : memref<32x64xf32, #tpu.memory_space<vmem>>, vector<32x64xf32>,
    } else {
    }
    return
  }
  func.func @transform_0(%arg0: i32, %arg1: i32, %arg2: i32) -> (i32, i32) {
    %c0_i32 = arith.constant 0 : i32
    return %arg0, %arg2 : i32, i32
  }
  func.func @transform_1(%arg0: i32, %arg1: i32, %arg2: i32) -> (i32, i32) {
    %c0_i32 = arith.constant 0 : i32
    return %arg2, %arg1 : i32, i32
  }
  func.func @transform_2(%arg0: i32, %arg1: i32, %arg2: i32) -> (i32, i32) {
    %c0_i32 = arith.constant 0 : i32
    %c0_i32_0 = arith.constant 0 : i32
    return %c0_i32, %arg1 : i32, i32
  }
  func.func @transform_3(%arg0: i32, %arg1: i32, %arg2: i32) -> (i32, i32) {
    %c0_i32 = arith.constant 0 : i32
    return %arg0, %arg1 : i32, i32
  }
  func.func @transform_4(%arg0: i32, %arg1: i32, %arg2: i32) -> (i32, i32) {
    %c0_i32 = arith.constant 0 : i32
    return %arg0, %arg1 : i32, i32
  }
}

</mosaic_0001>

<llo_original>
// kernel: transformer_forward.11
$region0: #{transformer_forward.11}
  #allocation0 [shape = 'u32[]', space=smem, size = 0x4, offset = 0x4, fixed_abs, tag = 'smem constant byte address 0x4 - core index']
  #allocation1 [shape = 'u32[72,128]{1,0:T(1,128)}', space=vmem, size = 0x9000, scoped, tag = 'internal scratch']
  %s0 = inlined_call_operand.hbm [shape: f32[32,64], index: 0, kind: input, shape index: {}]
  %s1 = inlined_call_operand.vmem [shape: f32[1,64], index: 1, kind: input, shape index: {}]
  %s2 = inlined_call_operand.vmem [shape: f32[1,64], index: 2, kind: input, shape index: {}]
  %s3 = inlined_call_operand.vmem [shape: bf16[32,64], index: 3, kind: output, shape index: {}]
  %s4 = sld [smem:[#allocation0]]
  $region26: #{transformer_forward.11} parent=0
    _
  %s6 = ssub.s32 1, %s4
  %s7 = scalar_select 0, %s6, %s4
  $region1: #{transformer_forward.11} parent=0
    #allocation2 [shape = 'u8[16384]{0}', space=vmem, size = 0x4000, scoped, tag = 'input window, operand 0, single buffered']
    #allocation3 [shape = 's32[1]{0}', space=sflag, size = 0x4, scoped, tag = 'scoped memory for transformer_forward.11']
    %8 = vsyncpa [#allocation3], 0
    // Predicated region
    $region2: #{transformer_forward.11} parent=1 // pred_check
      _
    $region3: #{transformer_forward.11} parent=1 // pred_check_branch
      %10 = sbr.rel (0) target = $region5
    $region4: #{transformer_forward.11} parent=1 // pred_region
      %12 = vsyncadd [#allocation3], 0
      %s13 = sshll.u32 %s0, 4
      %s14 = int_to_ptr.hbm [resolvable:$true] %s13
      %s15 = sshll.u32 [#allocation2], 4
      %s16 = int_to_ptr.vmem [resolvable:$true] %s15
      %21 = dma.hbm_to_vmem [thread:$0]  %s14, 512, %s16, [#allocation3], 128, 128, 8
    $region5: #{transformer_forward.11} parent=1 // pred_fallthru
      _
    // Predicated region
    $region6: #{transformer_forward.11} parent=1 // pred_check
      _
    $region7: #{transformer_forward.11} parent=1 // pred_check_branch
      %23 = sbr.rel (0) target = $region9
    $region8: #{transformer_forward.11} parent=1 // pred_region
      _
    $region9: #{transformer_forward.11} parent=1 // pred_fallthru
      _
    // Predicated region
    $region10: #{transformer_forward.11} parent=1 // pred_check
      _
    $region11: #{transformer_forward.11} parent=1 // pred_check_branch
      %25 = sbr.rel (0) target = $region13
    $region12: #{transformer_forward.11} parent=1 // pred_region
      _
    $region13: #{transformer_forward.11} parent=1 // pred_fallthru
      _
    // Predicated region
    $region14: #{transformer_forward.11} parent=1 // pred_check
      _
    $region15: #{transformer_forward.11} parent=1 // pred_check_branch
      %27 = sbr.rel (0) target = $region17
    $region16: #{transformer_forward.11} parent=1 // pred_region
      %29 = dma.done [#allocation3], 512
    $region17: #{transformer_forward.11} parent=1 // pred_fallthru
      _
    %v30 = vld [vmem:[#allocation2] sm:$0xff]
    %v31 = vld [vmem:[#allocation2 + $0x8] sm:$0xff]
    %v32 = vld [vmem:[#allocation2 + $0x10] sm:$0xff]
    %v33 = vld [vmem:[#allocation2 + $0x18] sm:$0xff]
    %vm34 = vcmask 523264
    %v35 = vsel %vm34, %v30, 0.0
    %36 = vadd.xlane.f32.xlu0 %v35
    %v37 = vpop.xlane.xlu0 %36
    %v38 = vsel %vm34, %v31, 0.0
    %39 = vadd.xlane.f32.xlu0 %v38
    %v40 = vpop.xlane.xlu0 %39
    %v41 = vsel %vm34, %v32, 0.0
    %42 = vadd.xlane.f32.xlu0 %v41
    %v43 = vpop.xlane.xlu0 %42
    %v44 = vsel %vm34, %v33, 0.0
    %45 = vadd.xlane.f32.xlu0 %v44
    %v46 = vpop.xlane.xlu0 %45
    %v47 = vrcp.pop 64.0
    %v48 = vmul.f32 64.0, %v47
    %v49 = vsub.f32 1.0, %v48
    %v50 = vmul.f32 %v47, %v49
    %v51 = vadd.f32 %v47, %v50
    %vm52 = vweird.f32 %v47
    %v53 = vsel %vm52, %v47, %v51
    %v54 = vmul.f32 %v37, %v53
    %v55 = vmul.f32 %v40, %v53
    %v56 = vmul.f32 %v43, %v53
    %v57 = vmul.f32 %v46, %v53
    %v58 = vsub.f32 %v30, %v54
    %v59 = vsub.f32 %v31, %v55
    %v60 = vsub.f32 %v32, %v56
    %v61 = vsub.f32 %v33, %v57
    %v62 = vmul.f32 %v58, %v58
    %v63 = vmul.f32 %v59, %v59
    %v64 = vmul.f32 %v60, %v60
    %v65 = vmul.f32 %v61, %v61
    %v66 = vsel %vm34, %v62, 0.0
    %67 = vadd.xlane.f32.xlu0 %v66
    %v68 = vpop.xlane.xlu0 %67
    %v69 = vsel %vm34, %v63, 0.0
    %70 = vadd.xlane.f32.xlu0 %v69
    %v71 = vpop.xlane.xlu0 %70
    %v72 = vsel %vm34, %v64, 0.0
    %73 = vadd.xlane.f32.xlu0 %v72
    %v74 = vpop.xlane.xlu0 %73
    %v75 = vsel %vm34, %v65, 0.0
    %76 = vadd.xlane.f32.xlu0 %v75
    %v77 = vpop.xlane.xlu0 %76
    %v78 = vmul.f32 %v68, %v53
    %v79 = vmul.f32 %v71, %v53
    %v80 = vmul.f32 %v74, %v53
    %v81 = vmul.f32 %v77, %v53
    %v82 = vadd.f32 %v78, 1e-05
    %v83 = vadd.f32 %v79, 1e-05
    %v84 = vadd.f32 %v80, 1e-05
    %v85 = vadd.f32 %v81, 1e-05
    %v86 = vrsqrt.pop %v82
    %v87 = vmul.f32 %v86, %v82
    %v88 = vmul.f32 %v87, %v86
    %v89 = vmul.f32 0.5, %v88
    %v90 = vsub.f32 1.5, %v89
    %v91 = vmul.f32 %v86, %v90
    %vm92 = vweird.f32 %v82
    %vm93 = vweird.f32 %v86
    %vm94 = vmor %vm92, %vm93
    %v95 = vsel %vm94, %v86, %v91
    %v96 = vrsqrt.pop %v83
    %v97 = vmul.f32 %v96, %v83
    %v98 = vmul.f32 %v97, %v96
    %v99 = vmul.f32 0.5, %v98
    %v100 = vsub.f32 1.5, %v99
    %v101 = vmul.f32 %v96, %v100
    %vm102 = vweird.f32 %v83
    %vm103 = vweird.f32 %v96
    %vm104 = vmor %vm102, %vm103
    %v105 = vsel %vm104, %v96, %v101
    %v106 = vrsqrt.pop %v84
    %v107 = vmul.f32 %v106, %v84
    %v108 = vmul.f32 %v107, %v106
    %v109 = vmul.f32 0.5, %v108
    %v110 = vsub.f32 1.5, %v109
    %v111 = vmul.f32 %v106, %v110
    %vm112 = vweird.f32 %v84
    %vm113 = vweird.f32 %v106
    %vm114 = vmor %vm112, %vm113
    %v115 = vsel %vm114, %v106, %v111
    %v116 = vrsqrt.pop %v85
    %v117 = vmul.f32 %v116, %v85
    %v118 = vmul.f32 %v117, %v116
    %v119 = vmul.f32 0.5, %v118
    %v120 = vsub.f32 1.5, %v119
    %v121 = vmul.f32 %v116, %v120
    %vm122 = vweird.f32 %v85
    %vm123 = vweird.f32 %v116
    %vm124 = vmor %vm122, %vm123
    %v125 = vsel %vm124, %v116, %v121
    %v126 = vmul.f32 %v58, %v95
    %v127 = vmul.f32 %v59, %v105
    %v128 = vmul.f32 %v60, %v115
    %v129 = vmul.f32 %v61, %v125
    %v130 = vld [vmem:[%s1] sm:$0x1]
    %v132 = vperm.slane %v130, 0
    %v134 = vmul.f32 %v126, %v132
    %v135 = vmul.f32 %v127, %v132
    %v136 = vmul.f32 %v128, %v132
    %v137 = vmul.f32 %v129, %v132
    %v138 = vld [vmem:[%s2] sm:$0x1]
    %v140 = vperm.slane %v138, 0
    %v142 = vadd.f32 %v134, %v140
    %v143 = vadd.f32 %v135, %v140
    %v144 = vadd.f32 %v136, %v140
    %v145 = vadd.f32 %v137, %v140
    %v146 = vpack.c.bf16 %v142, %v142
    %v147 = vpack.c.bf16 %v143, %v143
    %v148 = vpack.c.bf16 %v144, %v144
    %v149 = vpack.c.bf16 %v145, %v145
    %vm150 = vcmask 519168
    %151 = vst.msk [vmem:[%s3] sm:$0xf] %vm150, %v146
    %152 = vst.msk [vmem:[%s3 + $0x4] sm:$0xf] %vm150, %v147
    %153 = vst.msk [vmem:[%s3 + $0x8] sm:$0xf] %vm150, %v148
    %154 = vst.msk [vmem:[%s3 + $0xc] sm:$0xf] %vm150, %v149
    // Predicated region
    $region18: #{transformer_forward.11} parent=1 // pred_check
      _
    $region19: #{transformer_forward.11} parent=1 // pred_check_branch
      %156 = sbr.rel (0) target = $region21
    $region20: #{transformer_forward.11} parent=1 // pred_region
      _
    $region21: #{transformer_forward.11} parent=1 // pred_fallthru
      _
    // Predicated region
    $region22: #{transformer_forward.11} parent=1 // pred_check
      _
    $region23: #{transformer_forward.11} parent=1 // pred_check_branch
      %158 = sbr.rel (0) target = $region25
    $region24: #{transformer_forward.11} parent=1 // pred_region
      _
    $region25: #{transformer_forward.11} parent=1 // pred_fallthru
      _
    %159 = vsyncpa [#allocation3], 1

// kernel: transformer_forward.12
$region0: #{transformer_forward.12}
  #allocation0 [shape = 'u32[]', space=smem, size = 0x4, offset = 0x4, fixed_abs, tag = 'smem constant byte address 0x4 - core index']
  #allocation1 [shape = 'u32[72,128]{1,0:T(1,128)}', space=vmem, size = 0x9000, scoped, tag = 'internal scratch']
  #allocation2 [shape = 'f32[32,192]{1,0:T(8,128)}', space=vmem, size = 0x8000, scoped, tag = 'scratch operand']
  %s0 = inlined_call_operand.vmem [shape: bf16[32,64], index: 0, kind: input, shape index: {}]
  %s1 = inlined_call_operand.vmem [shape: bf16[64,192], index: 1, kind: input, shape index: {}]
  %s2 = inlined_call_operand.vmem [shape: bf16[32,192], index: 2, kind: output, shape index: {}]
  %s3 = sld [smem:[#allocation0]]
  $region26: #{transformer_forward.12} parent=0
    _
  %s5 = ssub.s32 1, %s3
  %s6 = scalar_select 0, %s5, %s3
  // Predicated region
  $region2: #{transformer_forward.12} parent=0 // pred_check
    _
  $region3: #{transformer_forward.12} parent=0 // pred_check_branch
    %8 = sbr.rel (0) target = $region5
  $region4: #{transformer_forward.12} parent=0 // pred_region
    _
  $region5: #{transformer_forward.12} parent=0 // pred_fallthru
    _
  // Predicated region
  $region6: #{transformer_forward.12} parent=0 // pred_check
    _
  $region7: #{transformer_forward.12} parent=0 // pred_check_branch
    %10 = sbr.rel (0) target = $region9
  $region8: #{transformer_forward.12} parent=0 // pred_region
    _
  $region9: #{transformer_forward.12} parent=0 // pred_fallthru
    _
  %p12 = scmp.eq.s32.totalorder 0, 0
  // Predicated region
  $region10: #{transformer_forward.12} parent=0 // pred_check
    %p13 = pneg %p12
  $region11: #{transformer_forward.12} parent=0 // pred_check_branch
    %15 = sbr.rel (%p13) target = $region13
  $region12: #{transformer_forward.12} parent=0 // pred_region
    %16 = vst [vmem:[#allocation2] sm:$0xff] 0.0
    %vm17 = vcmask 523264
    %18 = vst.msk [vmem:[#allocation2 + $0x8] sm:$0xff] %vm17, 0.0
    %19 = vst [vmem:[#allocation2 + $0x10] sm:$0xff] 0.0
    %20 = vst.msk [vmem:[#allocation2 + $0x18] sm:$0xff] %vm17, 0.0
    %21 = vst [vmem:[#allocation2 + $0x20] sm:$0xff] 0.0
    %22 = vst.msk [vmem:[#allocation2 + $0x28] sm:$0xff] %vm17, 0.0
    %23 = vst [vmem:[#allocation2 + $0x30] sm:$0xff] 0.0
    %24 = vst.msk [vmem:[#allocation2 + $0x38] sm:$0xff] %vm17, 0.0
  $region13: #{transformer_forward.12} parent=0 // pred_fallthru
    _
  %v25 = vld [vmem:[#allocation2] sm:$0xff]
  %v26 = vld [vmem:[#allocation2 + $0x8] sm:$0xff]
  %v27 = vld [vmem:[#allocation2 + $0x10] sm:$0xff]
  %v28 = vld [vmem:[#allocation2 + $0x18] sm:$0xff]
  %v29 = vld [vmem:[#allocation2 + $0x20] sm:$0xff]
  %v30 = vld [vmem:[#allocation2 + $0x28] sm:$0xff]
  %v31 = vld [vmem:[#allocation2 + $0x30] sm:$0xff]
  %v32 = vld [vmem:[#allocation2 + $0x38] sm:$0xff]
  %v33 = vld [vmem:[%s0] sm:$0xf]
  %v34 = vld [vmem:[%s0 + $0x4] sm:$0xf]
  %v35 = vld [vmem:[%s0 + $0x8] sm:$0xf]
  %v36 = vld [vmem:[%s0 + $0xc] sm:$0xf]
  %v37 = vld [vmem:[%s1] sm:$0xff]
  %v38 = vld [vmem:[%s1 + $0x8] sm:$0xff]
  %v39 = vld [vmem:[%s1 + $0x10] sm:$0xff]
  %v40 = vld [vmem:[%s1 + $0x18] sm:$0xff]
  %v41 = vld [vmem:[%s1 + $0x20] sm:$0xff]
  %v42 = vld [vmem:[%s1 + $0x28] sm:$0xff]
  %v43 = vld [vmem:[%s1 + $0x30] sm:$0xff]
  %v44 = vld [vmem:[%s1 + $0x38] sm:$0xff]
  %v49 = vunpack.c.l.b16 %v33
  %v50 = vunpack.c.l.b16 %v34
  %v51 = vunpack.c.l.b16 %v35
  %v52 = vunpack.c.l.b16 %v36
  %v53 = vpack.c.b16 %v50, %v49
  %v54 = vpack.c.b16 %v52, %v51
  %v63 = vunpack.c.l.b16 %v37
  %v64 = vunpack.c.h.b16 %v37
  %v65 = vunpack.c.l.b16 %v38
  %v66 = vunpack.c.h.b16 %v38
  %v67 = vunpack.c.l.b16 %v39
  %v68 = vunpack.c.h.b16 %v39
  %v69 = vunpack.c.l.b16 %v40
  %v70 = vunpack.c.h.b16 %v40
  %v71 = vunpack.c.l.b16 %v41
  %v72 = vunpack.c.h.b16 %v41
  %v73 = vunpack.c.l.b16 %v42
  %v74 = vunpack.c.h.b16 %v42
  %v75 = vunpack.c.l.b16 %v43
  %v76 = vunpack.c.h.b16 %v43
  %v77 = vunpack.c.l.b16 %v44
  %v78 = vunpack.c.h.b16 %v44
  %v79 = vpack.c.b16 %v65, %v63
  %v80 = vpack.c.b16 %v66, %v64
  %v81 = vpack.c.b16 %v69, %v67
  %v82 = vpack.c.b16 %v70, %v68
  %v83 = vpack.c.b16 %v73, %v71
  %v84 = vpack.c.b16 %v74, %v72
  %v85 = vpack.c.b16 %v77, %v75
  %v86 = vpack.c.b16 %v78, %v76
  %vm95 = vcmask 523264
  %v97 = vsel %vm95, %v53, 0
  %v100 = vsel %vm95, %v54, 0
  %102 = vmatpush.bf16.msra.mxu0 0
  %103 = vmatpush.bf16.msra.mxu0 0
  %104 = vmatpush.bf16.msra.mxu0 0
  %105 = vmatpush.bf16.msra.mxu0 0
  %106 = vmatpush.bf16.msra.mxu0 %v85
  %107 = vmatpush.bf16.msra.mxu0 %v83
  %108 = vmatpush.bf16.msra.mxu0 %v81
  %109 = vmatpush.bf16.msra.mxu0 %v79
  %110 = vmatmul.bf16.gmra.mxu0 %v97
  %v111 = vpop.f32.mrf.mxu0
  %v112 = vadd.f32 0.0, %v111
  %v113 = vpop.f32.mrf.mxu0
  %v114 = vadd.f32 0.0, %v113
  %115 = vmatmul.bf16.gmra.mxu0 %v100
  %v116 = vpop.f32.mrf.mxu0
  %v117 = vadd.f32 0.0, %v116
  %v118 = vpop.f32.mrf.mxu0
  %v119 = vadd.f32 0.0, %v118
  %120 = vdwg.mxu0
  %121 = vmatpush.bf16.msra.mxu0 0
  %122 = vmatpush.bf16.msra.mxu0 0
  %123 = vmatpush.bf16.msra.mxu0 0
  %124 = vmatpush.bf16.msra.mxu0 0
  %125 = vmatpush.bf16.msra.mxu0 %v86
  %126 = vmatpush.bf16.msra.mxu0 %v84
  %127 = vmatpush.bf16.msra.mxu0 %v82
  %128 = vmatpush.bf16.msra.mxu0 %v80
  %129 = vmatmul.bf16.gmra.mxu0 %v97
  %v130 = vpop.f32.mrf.mxu0
  %v131 = vadd.f32 0.0, %v130
  %v132 = vpop.f32.mrf.mxu0
  %v133 = vadd.f32 0.0, %v132
  %134 = vmatmul.bf16.gmra.mxu0 %v100
  %v135 = vpop.f32.mrf.mxu0
  %v136 = vadd.f32 0.0, %v135
  %v137 = vpop.f32.mrf.mxu0
  %v138 = vadd.f32 0.0, %v137
  %139 = vdwg.mxu0
  %v140 = vadd.f32 %v25, %v112
  %v141 = vadd.f32 %v26, %v131
  %v142 = vadd.f32 %v27, %v114
  %v143 = vadd.f32 %v28, %v133
  %v144 = vadd.f32 %v29, %v117
  %v145 = vadd.f32 %v30, %v136
  %v146 = vadd.f32 %v31, %v119
  %v147 = vadd.f32 %v32, %v138
  %148 = vst [vmem:[#allocation2] sm:$0xff] %v140
  %149 = vst.msk [vmem:[#allocation2 + $0x8] sm:$0xff] %vm95, %v141
  %150 = vst [vmem:[#allocation2 + $0x10] sm:$0xff] %v142
  %151 = vst.msk [vmem:[#allocation2 + $0x18] sm:$0xff] %vm95, %v143
  %152 = vst [vmem:[#allocation2 + $0x20] sm:$0xff] %v144
  %153 = vst.msk [vmem:[#allocation2 + $0x28] sm:$0xff] %vm95, %v145
  %154 = vst [vmem:[#allocation2 + $0x30] sm:$0xff] %v146
  %155 = vst.msk [vmem:[#allocation2 + $0x38] sm:$0xff] %vm95, %v147
  // Predicated region
  $region14: #{transformer_forward.12} parent=0 // pred_check
    %p156 = pneg %p12
  $region15: #{transformer_forward.12} parent=0 // pred_check_branch
    %158 = sbr.rel (%p156) target = $region17
  $region16: #{transformer_forward.12} parent=0 // pred_region
    %v159 = vld [vmem:[#allocation2] sm:$0xff]
    %v160 = vld [vmem:[#allocation2 + $0x8] sm:$0xff]
    %v161 = vld [vmem:[#allocation2 + $0x10] sm:$0xff]
    %v162 = vld [vmem:[#allocation2 + $0x18] sm:$0xff]
    %v163 = vld [vmem:[#allocation2 + $0x20] sm:$0xff]
    %v164 = vld [vmem:[#allocation2 + $0x28] sm:$0xff]
    %v165 = vld [vmem:[#allocation2 + $0x30] sm:$0xff]
    %v166 = vld [vmem:[#allocation2 + $0x38] sm:$0xff]
    %v167 = vpack.c.bf16 %v160, %v159
    %v168 = vpack.c.bf16 %v162, %v161
    %v169 = vpack.c.bf16 %v164, %v163
    %v170 = vpack.c.bf16 %v166, %v165
    %vm171 = vcmask 1043456
    %vm172 = vcmask 523268
    %vm173 = vmor %vm172, %vm171
    %174 = vst.msk [vmem:[%s2] sm:$0xff] %vm173, %v167
    %175 = vst.msk [vmem:[%s2 + $0x8] sm:$0xff] %vm173, %v168
    %176 = vst.msk [vmem:[%s2 + $0x10] sm:$0xff] %vm173, %v169
    %177 = vst.msk [vmem:[%s2 + $0x18] sm:$0xff] %vm173, %v170
  $region17: #{transformer_forward.12} parent=0 // pred_fallthru
    _
  // Predicated region
  $region18: #{transformer_forward.12} parent=0 // pred_check
    _
  $region19: #{transformer_forward.12} parent=0 // pred_check_branch
    %179 = sbr.rel (0) target = $region21
  $region20: #{transformer_forward.12} parent=0 // pred_region
    _
  $region21: #{transformer_forward.12} parent=0 // pred_fallthru
    _
  // Predicated region
  $region22: #{transformer_forward.12} parent=0 // pred_check
    _
  $region23: #{transformer_forward.12} parent=0 // pred_check_branch
    %181 = sbr.rel (0) target = $region25
  $region24: #{transformer_forward.12} parent=0 // pred_region
    _
  $region25: #{transformer_forward.12} parent=0 // pred_fallthru
    _

// kernel: transformer_forward.15
$region0: #{transformer_forward.15}
  #allocation0 [shape = 'u32[]', space=smem, size = 0x4, offset = 0x4, fixed_abs, tag = 'smem constant byte address 0x4 - core index']
  #allocation1 [shape = 'u32[72,128]{1,0:T(1,128)}', space=vmem, size = 0x9000, scoped, tag = 'internal scratch']
  #allocation2 [shape = 'f32[32,128]{1,0:T(8,128)}', space=vmem, size = 0x4000, scoped, tag = 'scratch operand']
  %s0 = inlined_call_operand.vmem [shape: bf16[32,64], index: 0, kind: input, shape index: {}]
  %s1 = inlined_call_operand.vmem [shape: bf16[64,128], index: 1, kind: input, shape index: {}]
  %s2 = inlined_call_operand.vmem [shape: f32[1,128], index: 2, kind: input, shape index: {}]
  %s3 = inlined_call_operand.vmem [shape: bf16[32,128], index: 3, kind: output, shape index: {}]
  %s4 = sld [smem:[#allocation0]]
  $region30: #{transformer_forward.15} parent=0
    _
  %s6 = ssub.s32 1, %s4
  %s7 = scalar_select 0, %s6, %s4
  // Predicated region
  $region2: #{transformer_forward.15} parent=0 // pred_check
    _
  $region3: #{transformer_forward.15} parent=0 // pred_check_branch
    %9 = sbr.rel (0) target = $region5
  $region4: #{transformer_forward.15} parent=0 // pred_region
    _
  $region5: #{transformer_forward.15} parent=0 // pred_fallthru
    _
  // Predicated region
  $region6: #{transformer_forward.15} parent=0 // pred_check
    _
  $region7: #{transformer_forward.15} parent=0 // pred_check_branch
    %11 = sbr.rel (0) target = $region9
  $region8: #{transformer_forward.15} parent=0 // pred_region
    _
  $region9: #{transformer_forward.15} parent=0 // pred_fallthru
    _
  // Predicated region
  $region10: #{transformer_forward.15} parent=0 // pred_check
    _
  $region11: #{transformer_forward.15} parent=0 // pred_check_branch
    %13 = sbr.rel (0) target = $region13
  $region12: #{transformer_forward.15} parent=0 // pred_region
    _
  $region13: #{transformer_forward.15} parent=0 // pred_fallthru
    _
  %p15 = scmp.eq.s32.totalorder 0, 0
  // Predicated region
  $region14: #{transformer_forward.15} parent=0 // pred_check
    %p16 = pneg %p15
  $region15: #{transformer_forward.15} parent=0 // pred_check_branch
    %18 = sbr.rel (%p16) target = $region17
  $region16: #{transformer_forward.15} parent=0 // pred_region
    %19 = vst [vmem:[#allocation2] sm:$0xff] 0.0
    %20 = vst [vmem:[#allocation2 + $0x8] sm:$0xff] 0.0
    %21 = vst [vmem:[#allocation2 + $0x10] sm:$0xff] 0.0
    %22 = vst [vmem:[#allocation2 + $0x18] sm:$0xff] 0.0
  $region17: #{transformer_forward.15} parent=0 // pred_fallthru
    _
  %v23 = vld [vmem:[#allocation2] sm:$0xff]
  %v24 = vld [vmem:[#allocation2 + $0x8] sm:$0xff]
  %v25 = vld [vmem:[#allocation2 + $0x10] sm:$0xff]
  %v26 = vld [vmem:[#allocation2 + $0x18] sm:$0xff]
  %v27 = vld [vmem:[%s0] sm:$0xf]
  %v28 = vld [vmem:[%s0 + $0x4] sm:$0xf]
  %v29 = vld [vmem:[%s0 + $0x8] sm:$0xf]
  %v30 = vld [vmem:[%s0 + $0xc] sm:$0xf]
  %v31 = vld [vmem:[%s1] sm:$0xf]
  %v32 = vld [vmem:[%s1 + $0x4] sm:$0xf]
  %v33 = vld [vmem:[%s1 + $0x8] sm:$0xf]
  %v34 = vld [vmem:[%s1 + $0xc] sm:$0xf]
  %v35 = vld [vmem:[%s1 + $0x10] sm:$0xf]
  %v36 = vld [vmem:[%s1 + $0x14] sm:$0xf]
  %v37 = vld [vmem:[%s1 + $0x18] sm:$0xf]
  %v38 = vld [vmem:[%s1 + $0x1c] sm:$0xf]
  %v43 = vunpack.c.l.b16 %v27
  %v44 = vunpack.c.l.b16 %v28
  %v45 = vunpack.c.l.b16 %v29
  %v46 = vunpack.c.l.b16 %v30
  %v47 = vpack.c.b16 %v44, %v43
  %v48 = vpack.c.b16 %v46, %v45
  %v57 = vunpack.c.l.b16 %v31
  %v58 = vunpack.c.l.b16 %v32
  %v59 = vunpack.c.l.b16 %v33
  %v60 = vunpack.c.l.b16 %v34
  %v61 = vunpack.c.l.b16 %v35
  %v62 = vunpack.c.l.b16 %v36
  %v63 = vunpack.c.l.b16 %v37
  %v64 = vunpack.c.l.b16 %v38
  %v65 = vpack.c.b16 %v58, %v57
  %v66 = vpack.c.b16 %v60, %v59
  %v67 = vpack.c.b16 %v62, %v61
  %v68 = vpack.c.b16 %v64, %v63
  %vm73 = vcmask 523264
  %v75 = vsel %vm73, %v47, 0
  %v78 = vsel %vm73, %v48, 0
  %80 = vmatpush.bf16.msra.mxu0 0
  %81 = vmatpush.bf16.msra.mxu0 0
  %82 = vmatpush.bf16.msra.mxu0 0
  %83 = vmatpush.bf16.msra.mxu0 0
  %84 = vmatpush.bf16.msra.mxu0 %v68
  %85 = vmatpush.bf16.msra.mxu0 %v67
  %86 = vmatpush.bf16.msra.mxu0 %v66
  %87 = vmatpush.bf16.msra.mxu0 %v65
  %88 = vmatmul.bf16.gmra.mxu0 %v75
  %v89 = vpop.f32.mrf.mxu0
  %v90 = vadd.f32 0.0, %v89
  %v91 = vpop.f32.mrf.mxu0
  %v92 = vadd.f32 0.0, %v91
  %93 = vmatmul.bf16.gmra.mxu0 %v78
  %v94 = vpop.f32.mrf.mxu0
  %v95 = vadd.f32 0.0, %v94
  %v96 = vpop.f32.mrf.mxu0
  %v97 = vadd.f32 0.0, %v96
  %98 = vdwg.mxu0
  %v99 = vadd.f32 %v23, %v90
  %v100 = vadd.f32 %v24, %v92
  %v101 = vadd.f32 %v25, %v95
  %v102 = vadd.f32 %v26, %v97
  %103 = vst [vmem:[#allocation2] sm:$0xff] %v99
  %104 = vst [vmem:[#allocation2 + $0x8] sm:$0xff] %v100
  %105 = vst [vmem:[#allocation2 + $0x10] sm:$0xff] %v101
  %106 = vst [vmem:[#allocation2 + $0x18] sm:$0xff] %v102
  // Predicated region
  $region18: #{transformer_forward.15} parent=0 // pred_check
    %p107 = pneg %p15
  $region19: #{transformer_forward.15} parent=0 // pred_check_branch
    %109 = sbr.rel (%p107) target = $region21
  $region20: #{transformer_forward.15} parent=0 // pred_region
    %v110 = vld [vmem:[#allocation2] sm:$0xff]
    %v111 = vld [vmem:[#allocation2 + $0x8] sm:$0xff]
    %v112 = vld [vmem:[#allocation2 + $0x10] sm:$0xff]
    %v113 = vld [vmem:[#allocation2 + $0x18] sm:$0xff]
    %v114 = vld [vmem:[%s2] sm:$0x1]
    %v116 = vperm.slane %v114, 0
    %v118 = vadd.f32 %v110, %v116
    %v119 = vadd.f32 %v111, %v116
    %v120 = vadd.f32 %v112, %v116
    %v121 = vadd.f32 %v113, %v116
    %v122 = vmul.f32 %v118, 0.5
    %v123 = vmul.f32 %v119, 0.5
    %v124 = vmul.f32 %v120, 0.5
    %v125 = vmul.f32 %v121, 0.5
    %v126 = vmul.f32 %v118, 0.044715
    %v127 = vmul.f32 %v119, 0.044715
    %v128 = vmul.f32 %v120, 0.044715
    %v129 = vmul.f32 %v121, 0.044715
    %v130 = vmul.f32 %v126, %v118
    %v131 = vmul.f32 %v127, %v119
    %v132 = vmul.f32 %v128, %v120
    %v133 = vmul.f32 %v129, %v121
    %v134 = vmul.f32 %v130, %v118
    %v135 = vmul.f32 %v131, %v119
    %v136 = vmul.f32 %v132, %v120
    %v137 = vmul.f32 %v133, %v121
    %v138 = vadd.f32 %v118, %v134
    %v139 = vadd.f32 %v119, %v135
    %v140 = vadd.f32 %v120, %v136
    %v141 = vadd.f32 %v121, %v137
    %v142 = vmul.f32 %v138, 0.7978846
    %v143 = vmul.f32 %v139, 0.7978846
    %v144 = vmul.f32 %v140, 0.7978846
    %v145 = vmul.f32 %v141, 0.7978846
    %v146 = vtanh.pop %v142
    %v147 = vtanh.pop %v143
    %v148 = vtanh.pop %v144
    %v149 = vtanh.pop %v145
    %v150 = vadd.f32 %v146, 1.0
    %v151 = vadd.f32 %v147, 1.0
    %v152 = vadd.f32 %v148, 1.0
    %v153 = vadd.f32 %v149, 1.0
    %v154 = vmul.f32 %v122, %v150
    %v155 = vmul.f32 %v123, %v151
    %v156 = vmul.f32 %v124, %v152
    %v157 = vmul.f32 %v125, %v153
    %v158 = vpack.c.bf16 %v154, %v154
    %v159 = vpack.c.bf16 %v155, %v155
    %v160 = vpack.c.bf16 %v156, %v156
    %v161 = vpack.c.bf16 %v157, %v157
    %162 = vst [vmem:[%s3] sm:$0xf] %v158
    %163 = vst [vmem:[%s3 + $0x4] sm:$0xf] %v159
    %164 = vst [vmem:[%s3 + $0x8] sm:$0xf] %v160
    %165 = vst [vmem:[%s3 + $0xc] sm:$0xf] %v161
  $region21: #{transformer_forward.15} parent=0 // pred_fallthru
    _
  // Predicated region
  $region22: #{transformer_forward.15} parent=0 // pred_check
    _
  $region23: #{transformer_forward.15} parent=0 // pred_check_branch
    %167 = sbr.rel (0) target = $region25
  $region24: #{transformer_forward.15} parent=0 // pred_region
    _
  $region25: #{transformer_forward.15} parent=0 // pred_fallthru
    _
  // Predicated region
  $region26: #{transformer_forward.15} parent=0 // pred_check
    _
  $region27: #{transformer_forward.15} parent=0 // pred_check_branch
    %169 = sbr.rel (0) target = $region29
  $region28: #{transformer_forward.15} parent=0 // pred_region
    _
  $region29: #{transformer_forward.15} parent=0 // pred_fallthru
    _

// kernel: transformer_forward.13
$region0: #{transformer_forward.13}
  #allocation0 [shape = 'u32[]', space=smem, size = 0x4, offset = 0x4, fixed_abs, tag = 'smem constant byte address 0x4 - core index']
  #allocation1 [shape = 'u32[72,128]{1,0:T(1,128)}', space=vmem, size = 0x9000, scoped, tag = 'internal scratch']
  %s0 = inlined_call_operand.vmem [shape: bf16[8,16,16], index: 0, kind: input, shape index: {}]
  %s1 = inlined_call_operand.vmem [shape: bf16[8,16,16], index: 1, kind: input, shape index: {}]
  %s2 = inlined_call_operand.vmem [shape: bf16[8,16,16], index: 2, kind: input, shape index: {}]
  %s3 = inlined_call_operand.vmem [shape: bf16[8,16,16], index: 3, kind: output, shape index: {}]
  %s4 = sld [smem:[#allocation0]]
  $region22: #{transformer_forward.13} parent=0
    _
  %s6 = ssub.s32 1, %s4
  %s7 = scalar_select 0, %s6, %s4
  // Predicated region
  $region2: #{transformer_forward.13} parent=0 // pred_check
    _
  $region3: #{transformer_forward.13} parent=0 // pred_check_branch
    %9 = sbr.rel (0) target = $region5
  $region4: #{transformer_forward.13} parent=0 // pred_region
    _
  $region5: #{transformer_forward.13} parent=0 // pred_fallthru
    _
  // Predicated region
  $region6: #{transformer_forward.13} parent=0 // pred_check
    _
  $region7: #{transformer_forward.13} parent=0 // pred_check_branch
    %11 = sbr.rel (0) target = $region9
  $region8: #{transformer_forward.13} parent=0 // pred_region
    _
  $region9: #{transformer_forward.13} parent=0 // pred_fallthru
    _
  // Predicated region
  $region10: #{transformer_forward.13} parent=0 // pred_check
    _
  $region11: #{transformer_forward.13} parent=0 // pred_check_branch
    %13 = sbr.rel (0) target = $region13
  $region12: #{transformer_forward.13} parent=0 // pred_region
    _
  $region13: #{transformer_forward.13} parent=0 // pred_fallthru
    _
  %v15 = vld [vmem:[%s0] sm:$0xf]
  %v16 = vld [vmem:[%s0 + $0x4] sm:$0xf]
  %v17 = vld [vmem:[%s0 + $0x8] sm:$0xf]
  %v18 = vld [vmem:[%s0 + $0xc] sm:$0xf]
  %v19 = vld [vmem:[%s0 + $0x10] sm:$0xf]
  %v20 = vld [vmem:[%s0 + $0x14] sm:$0xf]
  %v21 = vld [vmem:[%s0 + $0x18] sm:$0xf]
  %v22 = vld [vmem:[%s0 + $0x1c] sm:$0xf]
  %v23 = vld [vmem:[%s0 + $0x20] sm:$0xf]
  %v24 = vld [vmem:[%s0 + $0x24] sm:$0xf]
  %v25 = vld [vmem:[%s0 + $0x28] sm:$0xf]
  %v26 = vld [vmem:[%s0 + $0x2c] sm:$0xf]
  %v27 = vld [vmem:[%s0 + $0x30] sm:$0xf]
  %v28 = vld [vmem:[%s0 + $0x34] sm:$0xf]
  %v29 = vld [vmem:[%s0 + $0x38] sm:$0xf]
  %v30 = vld [vmem:[%s0 + $0x3c] sm:$0xf]
  %v31 = vld [vmem:[%s1] sm:$0xf]
  %v32 = vld [vmem:[%s1 + $0x4] sm:$0xf]
  %v33 = vld [vmem:[%s1 + $0x8] sm:$0xf]
  %v34 = vld [vmem:[%s1 + $0xc] sm:$0xf]
  %v35 = vld [vmem:[%s1 + $0x10] sm:$0xf]
  %v36 = vld [vmem:[%s1 + $0x14] sm:$0xf]
  %v37 = vld [vmem:[%s1 + $0x18] sm:$0xf]
  %v38 = vld [vmem:[%s1 + $0x1c] sm:$0xf]
  %v39 = vld [vmem:[%s1 + $0x20] sm:$0xf]
  %v40 = vld [vmem:[%s1 + $0x24] sm:$0xf]
  %v41 = vld [vmem:[%s1 + $0x28] sm:$0xf]
  %v42 = vld [vmem:[%s1 + $0x2c] sm:$0xf]
  %v43 = vld [vmem:[%s1 + $0x30] sm:$0xf]
  %v44 = vld [vmem:[%s1 + $0x34] sm:$0xf]
  %v45 = vld [vmem:[%s1 + $0x38] sm:$0xf]
  %v46 = vld [vmem:[%s1 + $0x3c] sm:$0xf]
  %v47 = vld [vmem:[%s2] sm:$0xf]
  %v48 = vld [vmem:[%s2 + $0x4] sm:$0xf]
  %v49 = vld [vmem:[%s2 + $0x8] sm:$0xf]
  %v50 = vld [vmem:[%s2 + $0xc] sm:$0xf]
  %v51 = vld [vmem:[%s2 + $0x10] sm:$0xf]
  %v52 = vld [vmem:[%s2 + $0x14] sm:$0xf]
  %v53 = vld [vmem:[%s2 + $0x18] sm:$0xf]
  %v54 = vld [vmem:[%s2 + $0x1c] sm:$0xf]
  %v55 = vld [vmem:[%s2 + $0x20] sm:$0xf]
  %v56 = vld [vmem:[%s2 + $0x24] sm:$0xf]
  %v57 = vld [vmem:[%s2 + $0x28] sm:$0xf]
  %v58 = vld [vmem:[%s2 + $0x2c] sm:$0xf]
  %v59 = vld [vmem:[%s2 + $0x30] sm:$0xf]
  %v60 = vld [vmem:[%s2 + $0x34] sm:$0xf]
  %v61 = vld [vmem:[%s2 + $0x38] sm:$0xf]
  %v62 = vld [vmem:[%s2 + $0x3c] sm:$0xf]
  %v65 = vunpack.c.l.b16 %v15
  %v66 = vunpack.c.l.b16 %v16
  %v67 = vpack.c.b16 %v66, %v65
  %v70 = vunpack.c.l.b16 %v31
  %v71 = vunpack.c.l.b16 %v32
  %v72 = vpack.c.b16 %v71, %v70
  %vm73 = vcmask 130048
  %v75 = vsel %vm73, %v67, 0
  %v78 = vsel %vm73, %v72, 0
  %80 = vmatpush.bf16.xpose.msra.mxu0 0
  %81 = vmatpush.bf16.xpose.msra.mxu0 0
  %82 = vmatpush.bf16.xpose.msra.mxu0 0
  %83 = vmatpush.bf16.xpose.msra.mxu0 0
  %84 = vmatpush.bf16.xpose.msra.mxu0 0
  %85 = vmatpush.bf16.xpose.msra.mxu0 0
  %86 = vmatpush.bf16.xpose.msra.mxu0 0
  %87 = vmatpush.bf16.xpose.msra.mxu0 %v78
  %88 = vmatmul.bf16.gmra.mxu0 %v75
  %v89 = vpop.f32.mrf.mxu0
  %v90 = vadd.f32 0.0, %v89
  %v91 = vpop.f32.mrf.mxu0
  %v92 = vadd.f32 0.0, %v91
  %93 = vdwg.mxu0
  %v96 = vunpack.c.l.b16 %v17
  %v97 = vunpack.c.l.b16 %v18
  %v98 = vpack.c.b16 %v97, %v96
  %v101 = vunpack.c.l.b16 %v33
  %v102 = vunpack.c.l.b16 %v34
  %v103 = vpack.c.b16 %v102, %v101
  %v105 = vsel %vm73, %v98, 0
  %v108 = vsel %vm73, %v103, 0
  %110 = vmatpush.bf16.xpose.msra.mxu0 0
  %111 = vmatpush.bf16.xpose.msra.mxu0 0
  %112 = vmatpush.bf16.xpose.msra.mxu0 0
  %113 = vmatpush.bf16.xpose.msra.mxu0 0
  %114 = vmatpush.bf16.xpose.msra.mxu0 0
  %115 = vmatpush.bf16.xpose.msra.mxu0 0
  %116 = vmatpush.bf16.xpose.msra.mxu0 0
  %117 = vmatpush.bf16.xpose.msra.mxu0 %v108
  %118 = vmatmul.bf16.gmra.mxu0 %v105
  %v119 = vpop.f32.mrf.mxu0
  %v120 = vadd.f32 0.0, %v119
  %v121 = vpop.f32.mrf.mxu0
  %v122 = vadd.f32 0.0, %v121
  %123 = vdwg.mxu0
  %v126 = vunpack.c.l.b16 %v19
  %v127 = vunpack.c.l.b16 %v20
  %v128 = vpack.c.b16 %v127, %v126
  %v131 = vunpack.c.l.b16 %v35
  %v132 = vunpack.c.l.b16 %v36
  %v133 = vpack.c.b16 %v132, %v131
  %v135 = vsel %vm73, %v128, 0
  %v138 = vsel %vm73, %v133, 0
  %140 = vmatpush.bf16.xpose.msra.mxu0 0
  %141 = vmatpush.bf16.xpose.msra.mxu0 0
  %142 = vmatpush.bf16.xpose.msra.mxu0 0
  %143 = vmatpush.bf16.xpose.msra.mxu0 0
  %144 = vmatpush.bf16.xpose.msra.mxu0 0
  %145 = vmatpush.bf16.xpose.msra.mxu0 0
  %146 = vmatpush.bf16.xpose.msra.mxu0 0
  %147 = vmatpush.bf16.xpose.msra.mxu0 %v138
  %148 = vmatmul.bf16.gmra.mxu0 %v135
  %v149 = vpop.f32.mrf.mxu0
  %v150 = vadd.f32 0.0, %v149
  %v151 = vpop.f32.mrf.mxu0
  %v152 = vadd.f32 0.0, %v151
  %153 = vdwg.mxu0
  %v156 = vunpack.c.l.b16 %v21
  %v157 = vunpack.c.l.b16 %v22
  %v158 = vpack.c.b16 %v157, %v156
  %v161 = vunpack.c.l.b16 %v37
  %v162 = vunpack.c.l.b16 %v38
  %v163 = vpack.c.b16 %v162, %v161
  %v165 = vsel %vm73, %v158, 0
  %v168 = vsel %vm73, %v163, 0
  %170 = vmatpush.bf16.xpose.msra.mxu0 0
  %171 = vmatpush.bf16.xpose.msra.mxu0 0
  %172 = vmatpush.bf16.xpose.msra.mxu0 0
  %173 = vmatpush.bf16.xpose.msra.mxu0 0
  %174 = vmatpush.bf16.xpose.msra.mxu0 0
  %175 = vmatpush.bf16.xpose.msra.mxu0 0
  %176 = vmatpush.bf16.xpose.msra.mxu0 0
  %177 = vmatpush.bf16.xpose.msra.mxu0 %v168
  %178 = vmatmul.bf16.gmra.mxu0 %v165
  %v179 = vpop.f32.mrf.mxu0
  %v180 = vadd.f32 0.0, %v179
  %v181 = vpop.f32.mrf.mxu0
  %v182 = vadd.f32 0.0, %v181
  %183 = vdwg.mxu0
  %v186 = vunpack.c.l.b16 %v23
  %v187 = vunpack.c.l.b16 %v24
  %v188 = vpack.c.b16 %v187, %v186
  %v191 = vunpack.c.l.b16 %v39
  %v192 = vunpack.c.l.b16 %v40
  %v193 = vpack.c.b16 %v192, %v191
  %v195 = vsel %vm73, %v188, 0
  %v198 = vsel %vm73, %v193, 0
  %200 = vmatpush.bf16.xpose.msra.mxu0 0
  %201 = vmatpush.bf16.xpose.msra.mxu0 0
  %202 = vmatpush.bf16.xpose.msra.mxu0 0
  %203 = vmatpush.bf16.xpose.msra.mxu0 0
  %204 = vmatpush.bf16.xpose.msra.mxu0 0
  %205 = vmatpush.bf16.xpose.msra.mxu0 0
  %206 = vmatpush.bf16.xpose.msra.mxu0 0
  %207 = vmatpush.bf16.xpose.msra.mxu0 %v198
  %208 = vmatmul.bf16.gmra.mxu0 %v195
  %v209 = vpop.f32.mrf.mxu0
  %v210 = vadd.f32 0.0, %v209
  %v211 = vpop.f32.mrf.mxu0
  %v212 = vadd.f32 0.0, %v211
  %213 = vdwg.mxu0
  %v216 = vunpack.c.l.b16 %v25
  %v217 = vunpack.c.l.b16 %v26
  %v218 = vpack.c.b16 %v217, %v216
  %v221 = vunpack.c.l.b16 %v41
  %v222 = vunpack.c.l.b16 %v42
  %v223 = vpack.c.b16 %v222, %v221
  %v225 = vsel %vm73, %v218, 0
  %v228 = vsel %vm73, %v223, 0
  %230 = vmatpush.bf16.xpose.msra.mxu0 0
  %231 = vmatpush.bf16.xpose.msra.mxu0 0
  %232 = vmatpush.bf16.xpose.msra.mxu0 0
  %233 = vmatpush.bf16.xpose.msra.mxu0 0
  %234 = vmatpush.bf16.xpose.msra.mxu0 0
  %235 = vmatpush.bf16.xpose.msra.mxu0 0
  %236 = vmatpush.bf16.xpose.msra.mxu0 0
  %237 = vmatpush.bf16.xpose.msra.mxu0 %v228
  %238 = vmatmul.bf16.gmra.mxu0 %v225
  %v239 = vpop.f32.mrf.mxu0
  %v240 = vadd.f32 0.0, %v239
  %v241 = vpop.f32.mrf.mxu0
  %v242 = vadd.f32 0.0, %v241
  %243 = vdwg.mxu0
  %v246 = vunpack.c.l.b16 %v27
  %v247 = vunpack.c.l.b16 %v28
  %v248 = vpack.c.b16 %v247, %v246
  %v251 = vunpack.c.l.b16 %v43
  %v252 = vunpack.c.l.b16 %v44
  %v253 = vpack.c.b16 %v252, %v251
  %v255 = vsel %vm73, %v248, 0
  %v258 = vsel %vm73, %v253, 0
  %260 = vmatpush.bf16.xpose.msra.mxu0 0
  %261 = vmatpush.bf16.xpose.msra.mxu0 0
  %262 = vmatpush.bf16.xpose.msra.mxu0 0
  %263 = vmatpush.bf16.xpose.msra.mxu0 0
  %264 = vmatpush.bf16.xpose.msra.mxu0 0
  %265 = vmatpush.bf16.xpose.msra.mxu0 0
  %266 = vmatpush.bf16.xpose.msra.mxu0 0
  %267 = vmatpush.bf16.xpose.msra.mxu0 %v258
  %268 = vmatmul.bf16.gmra.mxu0 %v255
  %v269 = vpop.f32.mrf.mxu0
  %v270 = vadd.f32 0.0, %v269
  %v271 = vpop.f32.mrf.mxu0
  %v272 = vadd.f32 0.0, %v271
  %273 = vdwg.mxu0
  %v276 = vunpack.c.l.b16 %v29
  %v277 = vunpack.c.l.b16 %v30
  %v278 = vpack.c.b16 %v277, %v276
  %v281 = vunpack.c.l.b16 %v45
  %v282 = vunpack.c.l.b16 %v46
  %v283 = vpack.c.b16 %v282, %v281
  %v285 = vsel %vm73, %v278, 0
  %v288 = vsel %vm73, %v283, 0
  %290 = vmatpush.bf16.xpose.msra.mxu0 0
  %291 = vmatpush.bf16.xpose.msra.mxu0 0
  %292 = vmatpush.bf16.xpose.msra.mxu0 0
  %293 = vmatpush.bf16.xpose.msra.mxu0 0
  %294 = vmatpush.bf16.xpose.msra.mxu0 0
  %295 = vmatpush.bf16.xpose.msra.mxu0 0
  %296 = vmatpush.bf16.xpose.msra.mxu0 0
  %297 = vmatpush.bf16.xpose.msra.mxu0 %v288
  %298 = vmatmul.bf16.gmra.mxu0 %v285
  %v299 = vpop.f32.mrf.mxu0
  %v300 = vadd.f32 0.0, %v299
  %v301 = vpop.f32.mrf.mxu0
  %v302 = vadd.f32 0.0, %v301
  %303 = vdwg.mxu0
  %v304 = vmul.f32 %v90, 0.25
  %v305 = vmul.f32 %v92, 0.25
  %v306 = vmul.f32 %v120, 0.25
  %v307 = vmul.f32 %v122, 0.25
  %v308 = vmul.f32 %v150, 0.25
  %v309 = vmul.f32 %v152, 0.25
  %v310 = vmul.f32 %v180, 0.25
  %v311 = vmul.f32 %v182, 0.25
  %v312 = vmul.f32 %v210, 0.25
  %v313 = vmul.f32 %v212, 0.25
  %v314 = vmul.f32 %v240, 0.25
  %v315 = vmul.f32 %v242, 0.25
  %v316 = vmul.f32 %v270, 0.25
  %v317 = vmul.f32 %v272, 0.25
  %v318 = vmul.f32 %v300, 0.25
  %v319 = vmul.f32 %v302, 0.25
  %v320 = vsel %vm73, %v304, -inf
  %321 = vmax.xlane.f32.xlu0 %v320
  %v322 = vpop.xlane.xlu0 %321
  %v323 = vsel %vm73, %v305, -inf
  %324 = vmax.xlane.f32.xlu0 %v323
  %v325 = vpop.xlane.xlu0 %324
  %v326 = vsel %vm73, %v306, -inf
  %327 = vmax.xlane.f32.xlu0 %v326
  %v328 = vpop.xlane.xlu0 %327
  %v329 = vsel %vm73, %v307, -inf
  %330 = vmax.xlane.f32.xlu0 %v329
  %v331 = vpop.xlane.xlu0 %330
  %v332 = vsel %vm73, %v308, -inf
  %333 = vmax.xlane.f32.xlu0 %v332
  %v334 = vpop.xlane.xlu0 %333
  %v335 = vsel %vm73, %v309, -inf
  %336 = vmax.xlane.f32.xlu0 %v335
  %v337 = vpop.xlane.xlu0 %336
  %v338 = vsel %vm73, %v310, -inf
  %339 = vmax.xlane.f32.xlu0 %v338
  %v340 = vpop.xlane.xlu0 %339
  %v341 = vsel %vm73, %v311, -inf
  %342 = vmax.xlane.f32.xlu0 %v341
  %v343 = vpop.xlane.xlu0 %342
  %v344 = vsel %vm73, %v312, -inf
  %345 = vmax.xlane.f32.xlu0 %v344
  %v346 = vpop.xlane.xlu0 %345
  %v347 = vsel %vm73, %v313, -inf
  %348 = vmax.xlane.f32.xlu0 %v347
  %v349 = vpop.xlane.xlu0 %348
  %v350 = vsel %vm73, %v314, -inf
  %351 = vmax.xlane.f32.xlu0 %v350
  %v352 = vpop.xlane.xlu0 %351
  %v353 = vsel %vm73, %v315, -inf
  %354 = vmax.xlane.f32.xlu0 %v353
  %v355 = vpop.xlane.xlu0 %354
  %v356 = vsel %vm73, %v316, -inf
  %357 = vmax.xlane.f32.xlu0 %v356
  %v358 = vpop.xlane.xlu0 %357
  %v359 = vsel %vm73, %v317, -inf
  %360 = vmax.xlane.f32.xlu0 %v359
  %v361 = vpop.xlane.xlu0 %360
  %v362 = vsel %vm73, %v318, -inf
  %363 = vmax.xlane.f32.xlu0 %v362
  %v364 = vpop.xlane.xlu0 %363
  %v365 = vsel %vm73, %v319, -inf
  %366 = vmax.xlane.f32.xlu0 %v365
  %v367 = vpop.xlane.xlu0 %366
  %v368 = vsub.f32 %v304, %v322
  %v369 = vsub.f32 %v305, %v325
  %v370 = vsub.f32 %v306, %v328
  %v371 = vsub.f32 %v307, %v331
  %v372 = vsub.f32 %v308, %v334
  %v373 = vsub.f32 %v309, %v337
  %v374 = vsub.f32 %v310, %v340
  %v375 = vsub.f32 %v311, %v343
  %v376 = vsub.f32 %v312, %v346
  %v377 = vsub.f32 %v313, %v349
  %v378 = vsub.f32 %v314, %v352
  %v379 = vsub.f32 %v315, %v355
  %v380 = vsub.f32 %v316, %v358
  %v381 = vsub.f32 %v317, %v361
  %v382 = vsub.f32 %v318, %v364
  %v383 = vsub.f32 %v319, %v367
  %v384 = vmul.f32 %v368, 1.442695
  %v385 = vpow.pop %v384
  %v386 = vmul.f32 %v369, 1.442695
  %v387 = vpow.pop %v386
  %v388 = vmul.f32 %v370, 1.442695
  %v389 = vpow.pop %v388
  %v390 = vmul.f32 %v371, 1.442695
  %v391 = vpow.pop %v390
  %v392 = vmul.f32 %v372, 1.442695
  %v393 = vpow.pop %v392
  %v394 = vmul.f32 %v373, 1.442695
  %v395 = vpow.pop %v394
  %v396 = vmul.f32 %v374, 1.442695
  %v397 = vpow.pop %v396
  %v398 = vmul.f32 %v375, 1.442695
  %v399 = vpow.pop %v398
  %v400 = vmul.f32 %v376, 1.442695
  %v401 = vpow.pop %v400
  %v402 = vmul.f32 %v377, 1.442695
  %v403 = vpow.pop %v402
  %v404 = vmul.f32 %v378, 1.442695
  %v405 = vpow.pop %v404
  %v406 = vmul.f32 %v379, 1.442695
  %v407 = vpow.pop %v406
  %v408 = vmul.f32 %v380, 1.442695
  %v409 = vpow.pop %v408
  %v410 = vmul.f32 %v381, 1.442695
  %v411 = vpow.pop %v410
  %v412 = vmul.f32 %v382, 1.442695
  %v413 = vpow.pop %v412
  %v414 = vmul.f32 %v383, 1.442695
  %v415 = vpow.pop %v414
  %v416 = vsel %vm73, %v385, 0.0
  %417 = vadd.xlane.f32.xlu0 %v416
  %v418 = vpop.xlane.xlu0 %417
  %v419 = vsel %vm73, %v387, 0.0
  %420 = vadd.xlane.f32.xlu0 %v419
  %v421 = vpop.xlane.xlu0 %420
  %v422 = vsel %vm73, %v389, 0.0
  %423 = vadd.xlane.f32.xlu0 %v422
  %v424 = vpop.xlane.xlu0 %423
  %v425 = vsel %vm73, %v391, 0.0
  %426 = vadd.xlane.f32.xlu0 %v425
  %v427 = vpop.xlane.xlu0 %426
  %v428 = vsel %vm73, %v393, 0.0
  %429 = vadd.xlane.f32.xlu0 %v428
  %v430 = vpop.xlane.xlu0 %429
  %v431 = vsel %vm73, %v395, 0.0
  %432 = vadd.xlane.f32.xlu0 %v431
  %v433 = vpop.xlane.xlu0 %432
  %v434 = vsel %vm73, %v397, 0.0
  %435 = vadd.xlane.f32.xlu0 %v434
  %v436 = vpop.xlane.xlu0 %435
  %v437 = vsel %vm73, %v399, 0.0
  %438 = vadd.xlane.f32.xlu0 %v437
  %v439 = vpop.xlane.xlu0 %438
  %v440 = vsel %vm73, %v401, 0.0
  %441 = vadd.xlane.f32.xlu0 %v440
  %v442 = vpop.xlane.xlu0 %441
  %v443 = vsel %vm73, %v403, 0.0
  %444 = vadd.xlane.f32.xlu0 %v443
  %v445 = vpop.xlane.xlu0 %444
  %v446 = vsel %vm73, %v405, 0.0
  %447 = vadd.xlane.f32.xlu0 %v446
  %v448 = vpop.xlane.xlu0 %447
  %v449 = vsel %vm73, %v407, 0.0
  %450 = vadd.xlane.f32.xlu0 %v449
  %v451 = vpop.xlane.xlu0 %450
  %v452 = vsel %vm73, %v409, 0.0
  %453 = vadd.xlane.f32.xlu0 %v452
  %v454 = vpop.xlane.xlu0 %453
  %v455 = vsel %vm73, %v411, 0.0
  %456 = vadd.xlane.f32.xlu0 %v455
  %v457 = vpop.xlane.xlu0 %456
  %v458 = vsel %vm73, %v413, 0.0
  %459 = vadd.xlane.f32.xlu0 %v458
  %v460 = vpop.xlane.xlu0 %459
  %v461 = vsel %vm73, %v415, 0.0
  %462 = vadd.xlane.f32.xlu0 %v461
  %v463 = vpop.xlane.xlu0 %462
  %v464 = vpack.c.bf16 %v385, %v385
  %v465 = vpack.c.bf16 %v387, %v387
  %v466 = vpack.c.bf16 %v389, %v389
  %v467 = vpack.c.bf16 %v391, %v391
  %v468 = vpack.c.bf16 %v393, %v393
  %v469 = vpack.c.bf16 %v395, %v395
  %v470 = vpack.c.bf16 %v397, %v397
  %v471 = vpack.c.bf16 %v399, %v399
  %v472 = vpack.c.bf16 %v401, %v401
  %v473 = vpack.c.bf16 %v403, %v403
  %v474 = vpack.c.bf16 %v405, %v405
  %v475 = vpack.c.bf16 %v407, %v407
  %v476 = vpack.c.bf16 %v409, %v409
  %v477 = vpack.c.bf16 %v411, %v411
  %v478 = vpack.c.bf16 %v413, %v413
  %v479 = vpack.c.bf16 %v415, %v415
  %v482 = vunpack.c.l.b16 %v464
  %v483 = vunpack.c.l.b16 %v465
  %v484 = vpack.c.b16 %v483, %v482
  %v487 = vunpack.c.l.b16 %v47
  %v488 = vunpack.c.l.b16 %v48
  %v489 = vpack.c.b16 %v488, %v487
  %v492 = vsel %vm73, %v484, 0
  %494 = vmatpush.bf16.msra.mxu0 0
  %495 = vmatpush.bf16.msra.mxu0 0
  %496 = vmatpush.bf16.msra.mxu0 0
  %497 = vmatpush.bf16.msra.mxu0 0
  %498 = vmatpush.bf16.msra.mxu0 0
  %499 = vmatpush.bf16.msra.mxu0 0
  %500 = vmatpush.bf16.msra.mxu0 0
  %501 = vmatpush.bf16.msra.mxu0 %v489
  %502 = vmatmul.bf16.gmra.mxu0 %v492
  %v503 = vpop.f32.mrf.mxu0
  %v504 = vadd.f32 0.0, %v503
  %v505 = vpop.f32.mrf.mxu0
  %v506 = vadd.f32 0.0, %v505
  %507 = vdwg.mxu0
  %v510 = vunpack.c.l.b16 %v466
  %v511 = vunpack.c.l.b16 %v467
  %v512 = vpack.c.b16 %v511, %v510
  %v515 = vunpack.c.l.b16 %v49
  %v516 = vunpack.c.l.b16 %v50
  %v517 = vpack.c.b16 %v516, %v515
  %v520 = vsel %vm73, %v512, 0
  %522 = vmatpush.bf16.msra.mxu0 0
  %523 = vmatpush.bf16.msra.mxu0 0
  %524 = vmatpush.bf16.msra.mxu0 0
  %525 = vmatpush.bf16.msra.mxu0 0
  %526 = vmatpush.bf16.msra.mxu0 0
  %527 = vmatpush.bf16.msra.mxu0 0
  %528 = vmatpush.bf16.msra.mxu0 0
  %529 = vmatpush.bf16.msra.mxu0 %v517
  %530 = vmatmul.bf16.gmra.mxu0 %v520
  %v531 = vpop.f32.mrf.mxu0
  %v532 = vadd.f32 0.0, %v531
  %v533 = vpop.f32.mrf.mxu0
  %v534 = vadd.f32 0.0, %v533
  %535 = vdwg.mxu0
  %v538 = vunpack.c.l.b16 %v468
  %v539 = vunpack.c.l.b16 %v469
  %v540 = vpack.c.b16 %v539, %v538
  %v543 = vunpack.c.l.b16 %v51
  %v544 = vunpack.c.l.b16 %v52
  %v545 = vpack.c.b16 %v544, %v543
  %v548 = vsel %vm73, %v540, 0
  %550 = vmatpush.bf16.msra.mxu0 0
  %551 = vmatpush.bf16.msra.mxu0 0
  %552 = vmatpush.bf16.msra.mxu0 0
  %553 = vmatpush.bf16.msra.mxu0 0
  %554 = vmatpush.bf16.msra.mxu0 0
  %555 = vmatpush.bf16.msra.mxu0 0
  %556 = vmatpush.bf16.msra.mxu0 0
  %557 = vmatpush.bf16.msra.mxu0 %v545
  %558 = vmatmul.bf16.gmra.mxu0 %v548
  %v559 = vpop.f32.mrf.mxu0
  %v560 = vadd.f32 0.0, %v559
  %v561 = vpop.f32.mrf.mxu0
  %v562 = vadd.f32 0.0, %v561
  %563 = vdwg.mxu0
  %v566 = vunpack.c.l.b16 %v470
  %v567 = vunpack.c.l.b16 %v471
  %v568 = vpack.c.b16 %v567, %v566
  %v571 = vunpack.c.l.b16 %v53
  %v572 = vunpack.c.l.b16 %v54
  %v573 = vpack.c.b16 %v572, %v571
  %v576 = vsel %vm73, %v568, 0
  %578 = vmatpush.bf16.msra.mxu0 0
  %579 = vmatpush.bf16.msra.mxu0 0
  %580 = vmatpush.bf16.msra.mxu0 0
  %581 = vmatpush.bf16.msra.mxu0 0
  %582 = vmatpush.bf16.msra.mxu0 0
  %583 = vmatpush.bf16.msra.mxu0 0
  %584 = vmatpush.bf16.msra.mxu0 0
  %585 = vmatpush.bf16.msra.mxu0 %v573
  %586 = vmatmul.bf16.gmra.mxu0 %v576
  %v587 = vpop.f32.mrf.mxu0
  %v588 = vadd.f32 0.0, %v587
  %v589 = vpop.f32.mrf.mxu0
  %v590 = vadd.f32 0.0, %v589
  %591 = vdwg.mxu0
  %v594 = vunpack.c.l.b16 %v472
  %v595 = vunpack.c.l.b16 %v473
  %v596 = vpack.c.b16 %v595, %v594
  %v599 = vunpack.c.l.b16 %v55
  %v600 = vunpack.c.l.b16 %v56
  %v601 = vpack.c.b16 %v600, %v599
  %v604 = vsel %vm73, %v596, 0
  %606 = vmatpush.bf16.msra.mxu0 0
  %607 = vmatpush.bf16.msra.mxu0 0
  %608 = vmatpush.bf16.msra.mxu0 0
  %609 = vmatpush.bf16.msra.mxu0 0
  %610 = vmatpush.bf16.msra.mxu0 0
  %611 = vmatpush.bf16.msra.mxu0 0
  %612 = vmatpush.bf16.msra.mxu0 0
  %613 = vmatpush.bf16.msra.mxu0 %v601
  %614 = vmatmul.bf16.gmra.mxu0 %v604
  %v615 = vpop.f32.mrf.mxu0
  %v616 = vadd.f32 0.0, %v615
  %v617 = vpop.f32.mrf.mxu0
  %v618 = vadd.f32 0.0, %v617
  %619 = vdwg.mxu0
  %v622 = vunpack.c.l.b16 %v474
  %v623 = vunpack.c.l.b16 %v475
  %v624 = vpack.c.b16 %v623, %v622
  %v627 = vunpack.c.l.b16 %v57
  %v628 = vunpack.c.l.b16 %v58
  %v629 = vpack.c.b16 %v628, %v627
  %v632 = vsel %vm73, %v624, 0
  %634 = vmatpush.bf16.msra.mxu0 0
  %635 = vmatpush.bf16.msra.mxu0 0
  %636 = vmatpush.bf16.msra.mxu0 0
  %637 = vmatpush.bf16.msra.mxu0 0
  %638 = vmatpush.bf16.msra.mxu0 0
  %639 = vmatpush.bf16.msra.mxu0 0
  %640 = vmatpush.bf16.msra.mxu0 0
  %641 = vmatpush.bf16.msra.mxu0 %v629
  %642 = vmatmul.bf16.gmra.mxu0 %v632
  %v643 = vpop.f32.mrf.mxu0
  %v644 = vadd.f32 0.0, %v643
  %v645 = vpop.f32.mrf.mxu0
  %v646 = vadd.f32 0.0, %v645
  %647 = vdwg.mxu0
  %v650 = vunpack.c.l.b16 %v476
  %v651 = vunpack.c.l.b16 %v477
  %v652 = vpack.c.b16 %v651, %v650
  %v655 = vunpack.c.l.b16 %v59
  %v656 = vunpack.c.l.b16 %v60
  %v657 = vpack.c.b16 %v656, %v655
  %v660 = vsel %vm73, %v652, 0
  %662 = vmatpush.bf16.msra.mxu0 0
  %663 = vmatpush.bf16.msra.mxu0 0
  %664 = vmatpush.bf16.msra.mxu0 0
  %665 = vmatpush.bf16.msra.mxu0 0
  %666 = vmatpush.bf16.msra.mxu0 0
  %667 = vmatpush.bf16.msra.mxu0 0
  %668 = vmatpush.bf16.msra.mxu0 0
  %669 = vmatpush.bf16.msra.mxu0 %v657
  %670 = vmatmul.bf16.gmra.mxu0 %v660
  %v671 = vpop.f32.mrf.mxu0
  %v672 = vadd.f32 0.0, %v671
  %v673 = vpop.f32.mrf.mxu0
  %v674 = vadd.f32 0.0, %v673
  %675 = vdwg.mxu0
  %v678 = vunpack.c.l.b16 %v478
  %v679 = vunpack.c.l.b16 %v479
  %v680 = vpack.c.b16 %v679, %v678
  %v683 = vunpack.c.l.b16 %v61
  %v684 = vunpack.c.l.b16 %v62
  %v685 = vpack.c.b16 %v684, %v683
  %v688 = vsel %vm73, %v680, 0
  %690 = vmatpush.bf16.msra.mxu0 0
  %691 = vmatpush.bf16.msra.mxu0 0
  %692 = vmatpush.bf16.msra.mxu0 0
  %693 = vmatpush.bf16.msra.mxu0 0
  %694 = vmatpush.bf16.msra.mxu0 0
  %695 = vmatpush.bf16.msra.mxu0 0
  %696 = vmatpush.bf16.msra.mxu0 0
  %697 = vmatpush.bf16.msra.mxu0 %v685
  %698 = vmatmul.bf16.gmra.mxu0 %v688
  %v699 = vpop.f32.mrf.mxu0
  %v700 = vadd.f32 0.0, %v699
  %v701 = vpop.f32.mrf.mxu0
  %v702 = vadd.f32 0.0, %v701
  %703 = vdwg.mxu0
  %v704 = vrcp.pop %v418
  %v705 = vrcp.pop %v421
  %v706 = vrcp.pop %v424
  %v707 = vrcp.pop %v427
  %v708 = vrcp.pop %v430
  %v709 = vrcp.pop %v433
  %v710 = vrcp.pop %v436
  %v711 = vrcp.pop %v439
  %v712 = vrcp.pop %v442
  %v713 = vrcp.pop %v445
  %v714 = vrcp.pop %v448
  %v715 = vrcp.pop %v451
  %v716 = vrcp.pop %v454
  %v717 = vrcp.pop %v457
  %v718 = vrcp.pop %v460
  %v719 = vrcp.pop %v463
  %v720 = vmul.f32 %v504, %v704
  %v721 = vmul.f32 %v506, %v705
  %v722 = vmul.f32 %v532, %v706
  %v723 = vmul.f32 %v534, %v707
  %v724 = vmul.f32 %v560, %v708
  %v725 = vmul.f32 %v562, %v709
  %v726 = vmul.f32 %v588, %v710
  %v727 = vmul.f32 %v590, %v711
  %v728 = vmul.f32 %v616, %v712
  %v729 = vmul.f32 %v618, %v713
  %v730 = vmul.f32 %v644, %v714
  %v731 = vmul.f32 %v646, %v715
  %v732 = vmul.f32 %v672, %v716
  %v733 = vmul.f32 %v674, %v717
  %v734 = vmul.f32 %v700, %v718
  %v735 = vmul.f32 %v702, %v719
  %v736 = vpack.c.bf16 %v720, %v720
  %v737 = vpack.c.bf16 %v721, %v721
  %v738 = vpack.c.bf16 %v722, %v722
  %v739 = vpack.c.bf16 %v723, %v723
  %v740 = vpack.c.bf16 %v724, %v724
  %v741 = vpack.c.bf16 %v725, %v725
  %v742 = vpack.c.bf16 %v726, %v726
  %v743 = vpack.c.bf16 %v727, %v727
  %v744 = vpack.c.bf16 %v728, %v728
  %v745 = vpack.c.bf16 %v729, %v729
  %v746 = vpack.c.bf16 %v730, %v730
  %v747 = vpack.c.bf16 %v731, %v731
  %v748 = vpack.c.bf16 %v732, %v732
  %v749 = vpack.c.bf16 %v733, %v733
  %v750 = vpack.c.bf16 %v734, %v734
  %v751 = vpack.c.bf16 %v735, %v735
  %vm752 = vcmask 125952
  %753 = vst.msk [vmem:[%s3] sm:$0xf] %vm752, %v736
  %754 = vst.msk [vmem:[%s3 + $0x4] sm:$0xf] %vm752, %v737
  %755 = vst.msk [vmem:[%s3 + $0x8] sm:$0xf] %vm752, %v738
  %756 = vst.msk [vmem:[%s3 + $0xc] sm:$0xf] %vm752, %v739
  %757 = vst.msk [vmem:[%s3 + $0x10] sm:$0xf] %vm752, %v740
  %758 = vst.msk [vmem:[%s3 + $0x14] sm:$0xf] %vm752, %v741
  %759 = vst.msk [vmem:[%s3 + $0x18] sm:$0xf] %vm752, %v742
  %760 = vst.msk [vmem:[%s3 + $0x1c] sm:$0xf] %vm752, %v743
  %761 = vst.msk [vmem:[%s3 + $0x20] sm:$0xf] %vm752, %v744
  %762 = vst.msk [vmem:[%s3 + $0x24] sm:$0xf] %vm752, %v745
  %763 = vst.msk [vmem:[%s3 + $0x28] sm:$0xf] %vm752, %v746
  %764 = vst.msk [vmem:[%s3 + $0x2c] sm:$0xf] %vm752, %v747
  %765 = vst.msk [vmem:[%s3 + $0x30] sm:$0xf] %vm752, %v748
  %766 = vst.msk [vmem:[%s3 + $0x34] sm:$0xf] %vm752, %v749
  %767 = vst.msk [vmem:[%s3 + $0x38] sm:$0xf] %vm752, %v750
  %768 = vst.msk [vmem:[%s3 + $0x3c] sm:$0xf] %vm752, %v751
  // Predicated region
  $region14: #{transformer_forward.13} parent=0 // pred_check
    _
  $region15: #{transformer_forward.13} parent=0 // pred_check_branch
    %770 = sbr.rel (0) target = $region17
  $region16: #{transformer_forward.13} parent=0 // pred_region
    _
  $region17: #{transformer_forward.13} parent=0 // pred_fallthru
    _
  // Predicated region
  $region18: #{transformer_forward.13} parent=0 // pred_check
    _
  $region19: #{transformer_forward.13} parent=0 // pred_check_branch
    %772 = sbr.rel (0) target = $region21
  $region20: #{transformer_forward.13} parent=0 // pred_region
    _
  $region21: #{transformer_forward.13} parent=0 // pred_fallthru
    _

// kernel: transformer_forward.14
$region0: #{transformer_forward.14}
  #allocation0 [shape = 'u32[]', space=smem, size = 0x4, offset = 0x4, fixed_abs, tag = 'smem constant byte address 0x4 - core index']
  #allocation1 [shape = 'u32[72,128]{1,0:T(1,128)}', space=vmem, size = 0x9000, scoped, tag = 'internal scratch']
  #allocation2 [shape = 'f32[32,64]{1,0:T(8,128)}', space=vmem, size = 0x4000, scoped, tag = 'scratch operand']
  %s0 = inlined_call_operand.vmem [shape: bf16[32,64], index: 0, kind: input, shape index: {}]
  %s1 = inlined_call_operand.vmem [shape: bf16[64,64], index: 1, kind: input, shape index: {}]
  %s2 = inlined_call_operand.vmem [shape: f32[1,64], index: 2, kind: input, shape index: {}]
  %s3 = inlined_call_operand.vmem [shape: f32[32,64], index: 3, kind: input, shape index: {}]
  %s4 = inlined_call_operand.vmem [shape: f32[1,64], index: 4, kind: input, shape index: {}]
  %s5 = inlined_call_operand.vmem [shape: f32[1,64], index: 5, kind: input, shape index: {}]
  %s6 = inlined_call_operand.vmem [shape: f32[32,64], index: 6, kind: output, shape index: {0}]
  %s7 = inlined_call_operand.vmem [shape: bf16[32,64], index: 7, kind: output, shape index: {1}]
  %8 = xla_tuple %s6, %s7
  %s9 = sld [smem:[#allocation0]]
  $region50: #{transformer_forward.14} parent=0
    _
  %s11 = ssub.s32 1, %s9
  %s12 = scalar_select 0, %s11, %s9
  // Predicated region
  $region2: #{transformer_forward.14} parent=0 // pred_check
    _
  $region3: #{transformer_forward.14} parent=0 // pred_check_branch
    %14 = sbr.rel (0) target = $region5
  $region4: #{transformer_forward.14} parent=0 // pred_region
    _
  $region5: #{transformer_forward.14} parent=0 // pred_fallthru
    _
  // Predicated region
  $region6: #{transformer_forward.14} parent=0 // pred_check
    _
  $region7: #{transformer_forward.14} parent=0 // pred_check_branch
    %16 = sbr.rel (0) target = $region9
  $region8: #{transformer_forward.14} parent=0 // pred_region
    _
  $region9: #{transformer_forward.14} parent=0 // pred_fallthru
    _
  // Predicated region
  $region10: #{transformer_forward.14} parent=0 // pred_check
    _
  $region11: #{transformer_forward.14} parent=0 // pred_check_branch
    %18 = sbr.rel (0) target = $region13
  $region12: #{transformer_forward.14} parent=0 // pred_region
    _
  $region13: #{transformer_forward.14} parent=0 // pred_fallthru
    _
  // Predicated region
  $region14: #{transformer_forward.14} parent=0 // pred_check
    _
  $region15: #{transformer_forward.14} parent=0 // pred_check_branch
    %20 = sbr.rel (0) target = $region17
  $region16: #{transformer_forward.14} parent=0 // pred_region
    _
  $region17: #{transformer_forward.14} parent=0 // pred_fallthru
    _
  // Predicated region
  $region18: #{transformer_forward.14} parent=0 // pred_check
    _
  $region19: #{transformer_forward.14} parent=0 // pred_check_branch
    %22 = sbr.rel (0) target = $region21
  $region20: #{transformer_forward.14} parent=0 // pred_region
    _
  $region21: #{transformer_forward.14} parent=0 // pred_fallthru
    _
  // Predicated region
  $region22: #{transformer_forward.14} parent=0 // pred_check
    _
  $region23: #{transformer_forward.14} parent=0 // pred_check_branch
    %24 = sbr.rel (0) target = $region25
  $region24: #{transformer_forward.14} parent=0 // pred_region
    _
  $region25: #{transformer_forward.14} parent=0 // pred_fallthru
    _
  %p26 = scmp.eq.s32.totalorder 0, 0
  // Predicated region
  $region26: #{transformer_forward.14} parent=0 // pred_check
    %p27 = pneg %p26
  $region27: #{transformer_forward.14} parent=0 // pred_check_branch
    %29 = sbr.rel (%p27) target = $region29
  $region28: #{transformer_forward.14} parent=0 // pred_region
    %vm30 = vcmask 523264
    %31 = vst.msk [vmem:[#allocation2] sm:$0xff] %vm30, 0.0
    %32 = vst.msk [vmem:[#allocation2 + $0x8] sm:$0xff] %vm30, 0.0
    %33 = vst.msk [vmem:[#allocation2 + $0x10] sm:$0xff] %vm30, 0.0
    %34 = vst.msk [vmem:[#allocation2 + $0x18] sm:$0xff] %vm30, 0.0
  $region29: #{transformer_forward.14} parent=0 // pred_fallthru
    _
  %v35 = vld [vmem:[#allocation2] sm:$0xff]
  %v36 = vld [vmem:[#allocation2 + $0x8] sm:$0xff]
  %v37 = vld [vmem:[#allocation2 + $0x10] sm:$0xff]
  %v38 = vld [vmem:[#allocation2 + $0x18] sm:$0xff]
  %v39 = vld [vmem:[%s0] sm:$0xf]
  %v40 = vld [vmem:[%s0 + $0x4] sm:$0xf]
  %v41 = vld [vmem:[%s0 + $0x8] sm:$0xf]
  %v42 = vld [vmem:[%s0 + $0xc] sm:$0xf]
  %v43 = vld [vmem:[%s1] sm:$0xf]
  %v44 = vld [vmem:[%s1 + $0x4] sm:$0xf]
  %v45 = vld [vmem:[%s1 + $0x8] sm:$0xf]
  %v46 = vld [vmem:[%s1 + $0xc] sm:$0xf]
  %v47 = vld [vmem:[%s1 + $0x10] sm:$0xf]
  %v48 = vld [vmem:[%s1 + $0x14] sm:$0xf]
  %v49 = vld [vmem:[%s1 + $0x18] sm:$0xf]
  %v50 = vld [vmem:[%s1 + $0x1c] sm:$0xf]
  %v55 = vunpack.c.l.b16 %v39
  %v56 = vunpack.c.l.b16 %v40
  %v57 = vunpack.c.l.b16 %v41
  %v58 = vunpack.c.l.b16 %v42
  %v59 = vpack.c.b16 %v56, %v55
  %v60 = vpack.c.b16 %v58, %v57
  %v69 = vunpack.c.l.b16 %v43
  %v70 = vunpack.c.l.b16 %v44
  %v71 = vunpack.c.l.b16 %v45
  %v72 = vunpack.c.l.b16 %v46
  %v73 = vunpack.c.l.b16 %v47
  %v74 = vunpack.c.l.b16 %v48
  %v75 = vunpack.c.l.b16 %v49
  %v76 = vunpack.c.l.b16 %v50
  %v77 = vpack.c.b16 %v70, %v69
  %v78 = vpack.c.b16 %v72, %v71
  %v79 = vpack.c.b16 %v74, %v73
  %v80 = vpack.c.b16 %v76, %v75
  %vm85 = vcmask 523264
  %v87 = vsel %vm85, %v59, 0
  %v90 = vsel %vm85, %v60, 0
  %92 = vmatpush.bf16.msra.mxu0 0
  %93 = vmatpush.bf16.msra.mxu0 0
  %94 = vmatpush.bf16.msra.mxu0 0
  %95 = vmatpush.bf16.msra.mxu0 0
  %96 = vmatpush.bf16.msra.mxu0 %v80
  %97 = vmatpush.bf16.msra.mxu0 %v79
  %98 = vmatpush.bf16.msra.mxu0 %v78
  %99 = vmatpush.bf16.msra.mxu0 %v77
  %100 = vmatmul.bf16.gmra.mxu0 %v87
  %v101 = vpop.f32.mrf.mxu0
  %v102 = vadd.f32 0.0, %v101
  %v103 = vpop.f32.mrf.mxu0
  %v104 = vadd.f32 0.0, %v103
  %105 = vmatmul.bf16.gmra.mxu0 %v90
  %v106 = vpop.f32.mrf.mxu0
  %v107 = vadd.f32 0.0, %v106
  %v108 = vpop.f32.mrf.mxu0
  %v109 = vadd.f32 0.0, %v108
  %110 = vdwg.mxu0
  %v111 = vadd.f32 %v35, %v102
  %v112 = vadd.f32 %v36, %v104
  %v113 = vadd.f32 %v37, %v107
  %v114 = vadd.f32 %v38, %v109
  %115 = vst.msk [vmem:[#allocation2] sm:$0xff] %vm85, %v111
  %116 = vst.msk [vmem:[#allocation2 + $0x8] sm:$0xff] %vm85, %v112
  %117 = vst.msk [vmem:[#allocation2 + $0x10] sm:$0xff] %vm85, %v113
  %118 = vst.msk [vmem:[#allocation2 + $0x18] sm:$0xff] %vm85, %v114
  // Predicated region
  $region30: #{transformer_forward.14} parent=0 // pred_check
    %p119 = pneg %p26
  $region31: #{transformer_forward.14} parent=0 // pred_check_branch
    %121 = sbr.rel (%p119) target = $region33
  $region32: #{transformer_forward.14} parent=0 // pred_region
    %v122 = vld [vmem:[#allocation2] sm:$0xff]
    %v123 = vld [vmem:[#allocation2 + $0x8] sm:$0xff]
    %v124 = vld [vmem:[#allocation2 + $0x10] sm:$0xff]
    %v125 = vld [vmem:[#allocation2 + $0x18] sm:$0xff]
    %v126 = vld [vmem:[%s2] sm:$0x1]
    %v128 = vperm.slane %v126, 0
    %v130 = vadd.f32 %v122, %v128
    %v131 = vadd.f32 %v123, %v128
    %v132 = vadd.f32 %v124, %v128
    %v133 = vadd.f32 %v125, %v128
    %v134 = vld [vmem:[%s3] sm:$0xff]
    %v135 = vld [vmem:[%s3 + $0x8] sm:$0xff]
    %v136 = vld [vmem:[%s3 + $0x10] sm:$0xff]
    %v137 = vld [vmem:[%s3 + $0x18] sm:$0xff]
    %v138 = vadd.f32 %v130, %v134
    %v139 = vadd.f32 %v131, %v135
    %v140 = vadd.f32 %v132, %v136
    %v141 = vadd.f32 %v133, %v137
    %142 = vst.msk [vmem:[%s6] sm:$0xff] %vm85, %v138
    %143 = vst.msk [vmem:[%s6 + $0x8] sm:$0xff] %vm85, %v139
    %144 = vst.msk [vmem:[%s6 + $0x10] sm:$0xff] %vm85, %v140
    %145 = vst.msk [vmem:[%s6 + $0x18] sm:$0xff] %vm85, %v141
    %v146 = vsel %vm85, %v138, 0.0
    %147 = vadd.xlane.f32.xlu0 %v146
    %v148 = vpop.xlane.xlu0 %147
    %v149 = vsel %vm85, %v139, 0.0
    %150 = vadd.xlane.f32.xlu0 %v149
    %v151 = vpop.xlane.xlu0 %150
    %v152 = vsel %vm85, %v140, 0.0
    %153 = vadd.xlane.f32.xlu0 %v152
    %v154 = vpop.xlane.xlu0 %153
    %v155 = vsel %vm85, %v141, 0.0
    %156 = vadd.xlane.f32.xlu0 %v155
    %v157 = vpop.xlane.xlu0 %156
    %v158 = vmul.f32 %v148, 0.015625
    %v159 = vmul.f32 %v151, 0.015625
    %v160 = vmul.f32 %v154, 0.015625
    %v161 = vmul.f32 %v157, 0.015625
    %v162 = vsub.f32 %v138, %v158
    %v163 = vsub.f32 %v139, %v159
    %v164 = vsub.f32 %v140, %v160
    %v165 = vsub.f32 %v141, %v161
    %v166 = vmul.f32 %v162, %v162
    %v167 = vmul.f32 %v163, %v163
    %v168 = vmul.f32 %v164, %v164
    %v169 = vmul.f32 %v165, %v165
    %v170 = vsel %vm85, %v166, 0.0
    %171 = vadd.xlane.f32.xlu0 %v170
    %v172 = vpop.xlane.xlu0 %171
    %v173 = vsel %vm85, %v167, 0.0
    %174 = vadd.xlane.f32.xlu0 %v173
    %v175 = vpop.xlane.xlu0 %174
    %v176 = vsel %vm85, %v168, 0.0
    %177 = vadd.xlane.f32.xlu0 %v176
    %v178 = vpop.xlane.xlu0 %177
    %v179 = vsel %vm85, %v169, 0.0
    %180 = vadd.xlane.f32.xlu0 %v179
    %v181 = vpop.xlane.xlu0 %180
    %v182 = vmul.f32 %v172, 0.015625
    %v183 = vmul.f32 %v175, 0.015625
    %v184 = vmul.f32 %v178, 0.015625
    %v185 = vmul.f32 %v181, 0.015625
    %v186 = vadd.f32 %v182, 1e-05
    %v187 = vadd.f32 %v183, 1e-05
    %v188 = vadd.f32 %v184, 1e-05
    %v189 = vadd.f32 %v185, 1e-05
    %v190 = vrsqrt.pop %v186
    %v191 = vmul.f32 %v190, %v186
    %v192 = vmul.f32 %v191, %v190
    %v193 = vmul.f32 0.5, %v192
    %v194 = vsub.f32 1.5, %v193
    %v195 = vmul.f32 %v190, %v194
    %vm196 = vweird.f32 %v186
    %vm197 = vweird.f32 %v190
    %vm198 = vmor %vm196, %vm197
    %v199 = vsel %vm198, %v190, %v195
    %v200 = vrsqrt.pop %v187
    %v201 = vmul.f32 %v200, %v187
    %v202 = vmul.f32 %v201, %v200
    %v203 = vmul.f32 0.5, %v202
    %v204 = vsub.f32 1.5, %v203
    %v205 = vmul.f32 %v200, %v204
    %vm206 = vweird.f32 %v187
    %vm207 = vweird.f32 %v200
    %vm208 = vmor %vm206, %vm207
    %v209 = vsel %vm208, %v200, %v205
    %v210 = vrsqrt.pop %v188
    %v211 = vmul.f32 %v210, %v188
    %v212 = vmul.f32 %v211, %v210
    %v213 = vmul.f32 0.5, %v212
    %v214 = vsub.f32 1.5, %v213
    %v215 = vmul.f32 %v210, %v214
    %vm216 = vweird.f32 %v188
    %vm217 = vweird.f32 %v210
    %vm218 = vmor %vm216, %vm217
    %v219 = vsel %vm218, %v210, %v215
    %v220 = vrsqrt.pop %v189
    %v221 = vmul.f32 %v220, %v189
    %v222 = vmul.f32 %v221, %v220
    %v223 = vmul.f32 0.5, %v222
    %v224 = vsub.f32 1.5, %v223
    %v225 = vmul.f32 %v220, %v224
    %vm226 = vweird.f32 %v189
    %vm227 = vweird.f32 %v220
    %vm228 = vmor %vm226, %vm227
    %v229 = vsel %vm228, %v220, %v225
    %v230 = vmul.f32 %v162, %v199
    %v231 = vmul.f32 %v163, %v209
    %v232 = vmul.f32 %v164, %v219
    %v233 = vmul.f32 %v165, %v229
    %v234 = vld [vmem:[%s4] sm:$0x1]
    %v236 = vperm.slane %v234, 0
    %v238 = vmul.f32 %v230, %v236
    %v239 = vmul.f32 %v231, %v236
    %v240 = vmul.f32 %v232, %v236
    %v241 = vmul.f32 %v233, %v236
    %v242 = vld [vmem:[%s5] sm:$0x1]
    %v244 = vperm.slane %v242, 0
    %v246 = vadd.f32 %v238, %v244
    %v247 = vadd.f32 %v239, %v244
    %v248 = vadd.f32 %v240, %v244
    %v249 = vadd.f32 %v241, %v244
    %v250 = vpack.c.bf16 %v246, %v246
    %v251 = vpack.c.bf16 %v247, %v247
    %v252 = vpack.c.bf16 %v248, %v248
    %v253 = vpack.c.bf16 %v249, %v249
    %vm254 = vcmask 519168
    %255 = vst.msk [vmem:[%s7] sm:$0xf] %vm254, %v250
    %256 = vst.msk [vmem:[%s7 + $0x4] sm:$0xf] %vm254, %v251
    %257 = vst.msk [vmem:[%s7 + $0x8] sm:$0xf] %vm254, %v252
    %258 = vst.msk [vmem:[%s7 + $0xc] sm:$0xf] %vm254, %v253
  $region33: #{transformer_forward.14} parent=0 // pred_fallthru
    _
  // Predicated region
  $region34: #{transformer_forward.14} parent=0 // pred_check
    _
  $region35: #{transformer_forward.14} parent=0 // pred_check_branch
    %260 = sbr.rel (0) target = $region37
  $region36: #{transformer_forward.14} parent=0 // pred_region
    _
  $region37: #{transformer_forward.14} parent=0 // pred_fallthru
    _
  // Predicated region
  $region38: #{transformer_forward.14} parent=0 // pred_check
    _
  $region39: #{transformer_forward.14} parent=0 // pred_check_branch
    %262 = sbr.rel (0) target = $region41
  $region40: #{transformer_forward.14} parent=0 // pred_region
    _
  $region41: #{transformer_forward.14} parent=0 // pred_fallthru
    _
  // Predicated region
  $region42: #{transformer_forward.14} parent=0 // pred_check
    _
  $region43: #{transformer_forward.14} parent=0 // pred_check_branch
    %264 = sbr.rel (0) target = $region45
  $region44: #{transformer_forward.14} parent=0 // pred_region
    _
  $region45: #{transformer_forward.14} parent=0 // pred_fallthru
    _
  // Predicated region
  $region46: #{transformer_forward.14} parent=0 // pred_check
    _
  $region47: #{transformer_forward.14} parent=0 // pred_check_branch
    %266 = sbr.rel (0) target = $region49
  $region48: #{transformer_forward.14} parent=0 // pred_region
    _
  $region49: #{transformer_forward.14} parent=0 // pred_fallthru
    _

// kernel: transformer_forward.16
$region0: #{transformer_forward.16}
  #allocation0 [shape = 'u32[]', space=smem, size = 0x4, offset = 0x4, fixed_abs, tag = 'smem constant byte address 0x4 - core index']
  #allocation1 [shape = 'u32[72,128]{1,0:T(1,128)}', space=vmem, size = 0x9000, scoped, tag = 'internal scratch']
  #allocation2 [shape = 'f32[32,64]{1,0:T(8,128)}', space=vmem, size = 0x4000, scoped, tag = 'scratch operand']
  %s0 = inlined_call_operand.vmem [shape: bf16[32,128], index: 0, kind: input, shape index: {}]
  %s1 = inlined_call_operand.vmem [shape: bf16[128,64], index: 1, kind: input, shape index: {}]
  %s2 = inlined_call_operand.vmem [shape: f32[1,64], index: 2, kind: input, shape index: {}]
  %s3 = inlined_call_operand.vmem [shape: f32[32,64], index: 3, kind: input, shape index: {}]
  %s4 = inlined_call_operand.vmem [shape: f32[1,64], index: 4, kind: input, shape index: {}]
  %s5 = inlined_call_operand.vmem [shape: f32[1,64], index: 5, kind: input, shape index: {}]
  %s6 = inlined_call_operand.vmem [shape: f32[32,64], index: 6, kind: output, shape index: {0}]
  %s7 = inlined_call_operand.vmem [shape: bf16[32,64], index: 7, kind: output, shape index: {1}]
  %8 = xla_tuple %s6, %s7
  %s9 = sld [smem:[#allocation0]]
  $region50: #{transformer_forward.16} parent=0
    _
  %s11 = ssub.s32 1, %s9
  %s12 = scalar_select 0, %s11, %s9
  // Predicated region
  $region2: #{transformer_forward.16} parent=0 // pred_check
    _
  $region3: #{transformer_forward.16} parent=0 // pred_check_branch
    %14 = sbr.rel (0) target = $region5
  $region4: #{transformer_forward.16} parent=0 // pred_region
    _
  $region5: #{transformer_forward.16} parent=0 // pred_fallthru
    _
  // Predicated region
  $region6: #{transformer_forward.16} parent=0 // pred_check
    _
  $region7: #{transformer_forward.16} parent=0 // pred_check_branch
    %16 = sbr.rel (0) target = $region9
  $region8: #{transformer_forward.16} parent=0 // pred_region
    _
  $region9: #{transformer_forward.16} parent=0 // pred_fallthru
    _
  // Predicated region
  $region10: #{transformer_forward.16} parent=0 // pred_check
    _
  $region11: #{transformer_forward.16} parent=0 // pred_check_branch
    %18 = sbr.rel (0) target = $region13
  $region12: #{transformer_forward.16} parent=0 // pred_region
    _
  $region13: #{transformer_forward.16} parent=0 // pred_fallthru
    _
  // Predicated region
  $region14: #{transformer_forward.16} parent=0 // pred_check
    _
  $region15: #{transformer_forward.16} parent=0 // pred_check_branch
    %20 = sbr.rel (0) target = $region17
  $region16: #{transformer_forward.16} parent=0 // pred_region
    _
  $region17: #{transformer_forward.16} parent=0 // pred_fallthru
    _
  // Predicated region
  $region18: #{transformer_forward.16} parent=0 // pred_check
    _
  $region19: #{transformer_forward.16} parent=0 // pred_check_branch
    %22 = sbr.rel (0) target = $region21
  $region20: #{transformer_forward.16} parent=0 // pred_region
    _
  $region21: #{transformer_forward.16} parent=0 // pred_fallthru
    _
  // Predicated region
  $region22: #{transformer_forward.16} parent=0 // pred_check
    _
  $region23: #{transformer_forward.16} parent=0 // pred_check_branch
    %24 = sbr.rel (0) target = $region25
  $region24: #{transformer_forward.16} parent=0 // pred_region
    _
  $region25: #{transformer_forward.16} parent=0 // pred_fallthru
    _
  %p25 = scmp.eq.s32.totalorder 0, 0
  // Predicated region
  $region26: #{transformer_forward.16} parent=0 // pred_check
    %p26 = pneg %p25
  $region27: #{transformer_forward.16} parent=0 // pred_check_branch
    %28 = sbr.rel (%p26) target = $region29
  $region28: #{transformer_forward.16} parent=0 // pred_region
    %vm29 = vcmask 523264
    %30 = vst.msk [vmem:[#allocation2] sm:$0xff] %vm29, 0.0
    %31 = vst.msk [vmem:[#allocation2 + $0x8] sm:$0xff] %vm29, 0.0
    %32 = vst.msk [vmem:[#allocation2 + $0x10] sm:$0xff] %vm29, 0.0
    %33 = vst.msk [vmem:[#allocation2 + $0x18] sm:$0xff] %vm29, 0.0
  $region29: #{transformer_forward.16} parent=0 // pred_fallthru
    _
  %v34 = vld [vmem:[#allocation2] sm:$0xff]
  %v35 = vld [vmem:[#allocation2 + $0x8] sm:$0xff]
  %v36 = vld [vmem:[#allocation2 + $0x10] sm:$0xff]
  %v37 = vld [vmem:[#allocation2 + $0x18] sm:$0xff]
  %v38 = vld [vmem:[%s0] sm:$0xf]
  %v39 = vld [vmem:[%s0 + $0x4] sm:$0xf]
  %v40 = vld [vmem:[%s0 + $0x8] sm:$0xf]
  %v41 = vld [vmem:[%s0 + $0xc] sm:$0xf]
  %v42 = vld [vmem:[%s1] sm:$0xf]
  %v43 = vld [vmem:[%s1 + $0x4] sm:$0xf]
  %v44 = vld [vmem:[%s1 + $0x8] sm:$0xf]
  %v45 = vld [vmem:[%s1 + $0xc] sm:$0xf]
  %v46 = vld [vmem:[%s1 + $0x10] sm:$0xf]
  %v47 = vld [vmem:[%s1 + $0x14] sm:$0xf]
  %v48 = vld [vmem:[%s1 + $0x18] sm:$0xf]
  %v49 = vld [vmem:[%s1 + $0x1c] sm:$0xf]
  %v50 = vld [vmem:[%s1 + $0x20] sm:$0xf]
  %v51 = vld [vmem:[%s1 + $0x24] sm:$0xf]
  %v52 = vld [vmem:[%s1 + $0x28] sm:$0xf]
  %v53 = vld [vmem:[%s1 + $0x2c] sm:$0xf]
  %v54 = vld [vmem:[%s1 + $0x30] sm:$0xf]
  %v55 = vld [vmem:[%s1 + $0x34] sm:$0xf]
  %v56 = vld [vmem:[%s1 + $0x38] sm:$0xf]
  %v57 = vld [vmem:[%s1 + $0x3c] sm:$0xf]
  %v62 = vunpack.c.l.b16 %v38
  %v63 = vunpack.c.l.b16 %v39
  %v64 = vunpack.c.l.b16 %v40
  %v65 = vunpack.c.l.b16 %v41
  %v66 = vpack.c.b16 %v63, %v62
  %v67 = vpack.c.b16 %v65, %v64
  %v86 = vunpack.c.l.b16 %v42
  %v87 = vunpack.c.l.b16 %v43
  %v88 = vunpack.c.l.b16 %v44
  %v89 = vunpack.c.l.b16 %v45
  %v90 = vunpack.c.l.b16 %v46
  %v91 = vunpack.c.l.b16 %v47
  %v92 = vunpack.c.l.b16 %v48
  %v93 = vunpack.c.l.b16 %v49
  %v94 = vunpack.c.l.b16 %v50
  %v95 = vunpack.c.l.b16 %v51
  %v96 = vunpack.c.l.b16 %v52
  %v97 = vunpack.c.l.b16 %v53
  %v98 = vunpack.c.l.b16 %v54
  %v99 = vunpack.c.l.b16 %v55
  %v100 = vunpack.c.l.b16 %v56
  %v101 = vunpack.c.l.b16 %v57
  %v102 = vpack.c.b16 %v87, %v86
  %v103 = vpack.c.b16 %v89, %v88
  %v104 = vpack.c.b16 %v91, %v90
  %v105 = vpack.c.b16 %v93, %v92
  %v106 = vpack.c.b16 %v95, %v94
  %v107 = vpack.c.b16 %v97, %v96
  %v108 = vpack.c.b16 %v99, %v98
  %v109 = vpack.c.b16 %v101, %v100
  %118 = vmatpush.bf16.msra.mxu0 %v109
  %119 = vmatpush.bf16.msra.mxu0 %v108
  %120 = vmatpush.bf16.msra.mxu0 %v107
  %121 = vmatpush.bf16.msra.mxu0 %v106
  %122 = vmatpush.bf16.msra.mxu0 %v105
  %123 = vmatpush.bf16.msra.mxu0 %v104
  %124 = vmatpush.bf16.msra.mxu0 %v103
  %125 = vmatpush.bf16.msra.mxu0 %v102
  %126 = vmatmul.bf16.gmra.mxu0 %v66
  %v127 = vpop.f32.mrf.mxu0
  %v128 = vadd.f32 0.0, %v127
  %v129 = vpop.f32.mrf.mxu0
  %v130 = vadd.f32 0.0, %v129
  %131 = vmatmul.bf16.gmra.mxu0 %v67
  %v132 = vpop.f32.mrf.mxu0
  %v133 = vadd.f32 0.0, %v132
  %v134 = vpop.f32.mrf.mxu0
  %v135 = vadd.f32 0.0, %v134
  %136 = vdwg.mxu0
  %v137 = vadd.f32 %v34, %v128
  %v138 = vadd.f32 %v35, %v130
  %v139 = vadd.f32 %v36, %v133
  %v140 = vadd.f32 %v37, %v135
  %vm141 = vcmask 523264
  %142 = vst.msk [vmem:[#allocation2] sm:$0xff] %vm141, %v137
  %143 = vst.msk [vmem:[#allocation2 + $0x8] sm:$0xff] %vm141, %v138
  %144 = vst.msk [vmem:[#allocation2 + $0x10] sm:$0xff] %vm141, %v139
  %145 = vst.msk [vmem:[#allocation2 + $0x18] sm:$0xff] %vm141, %v140
  // Predicated region
  $region30: #{transformer_forward.16} parent=0 // pred_check
    %p146 = pneg %p25
  $region31: #{transformer_forward.16} parent=0 // pred_check_branch
    %148 = sbr.rel (%p146) target = $region33
  $region32: #{transformer_forward.16} parent=0 // pred_region
    %v149 = vld [vmem:[#allocation2] sm:$0xff]
    %v150 = vld [vmem:[#allocation2 + $0x8] sm:$0xff]
    %v151 = vld [vmem:[#allocation2 + $0x10] sm:$0xff]
    %v152 = vld [vmem:[#allocation2 + $0x18] sm:$0xff]
    %v153 = vld [vmem:[%s2] sm:$0x1]
    %v155 = vperm.slane %v153, 0
    %v157 = vadd.f32 %v149, %v155
    %v158 = vadd.f32 %v150, %v155
    %v159 = vadd.f32 %v151, %v155
    %v160 = vadd.f32 %v152, %v155
    %v161 = vld [vmem:[%s3] sm:$0xff]
    %v162 = vld [vmem:[%s3 + $0x8] sm:$0xff]
    %v163 = vld [vmem:[%s3 + $0x10] sm:$0xff]
    %v164 = vld [vmem:[%s3 + $0x18] sm:$0xff]
    %v165 = vadd.f32 %v157, %v161
    %v166 = vadd.f32 %v158, %v162
    %v167 = vadd.f32 %v159, %v163
    %v168 = vadd.f32 %v160, %v164
    %169 = vst.msk [vmem:[%s6] sm:$0xff] %vm141, %v165
    %170 = vst.msk [vmem:[%s6 + $0x8] sm:$0xff] %vm141, %v166
    %171 = vst.msk [vmem:[%s6 + $0x10] sm:$0xff] %vm141, %v167
    %172 = vst.msk [vmem:[%s6 + $0x18] sm:$0xff] %vm141, %v168
    %v173 = vsel %vm141, %v165, 0.0
    %174 = vadd.xlane.f32.xlu0 %v173
    %v175 = vpop.xlane.xlu0 %174
    %v176 = vsel %vm141, %v166, 0.0
    %177 = vadd.xlane.f32.xlu0 %v176
    %v178 = vpop.xlane.xlu0 %177
    %v179 = vsel %vm141, %v167, 0.0
    %180 = vadd.xlane.f32.xlu0 %v179
    %v181 = vpop.xlane.xlu0 %180
    %v182 = vsel %vm141, %v168, 0.0
    %183 = vadd.xlane.f32.xlu0 %v182
    %v184 = vpop.xlane.xlu0 %183
    %v185 = vmul.f32 %v175, 0.015625
    %v186 = vmul.f32 %v178, 0.015625
    %v187 = vmul.f32 %v181, 0.015625
    %v188 = vmul.f32 %v184, 0.015625
    %v189 = vsub.f32 %v165, %v185
    %v190 = vsub.f32 %v166, %v186
    %v191 = vsub.f32 %v167, %v187
    %v192 = vsub.f32 %v168, %v188
    %v193 = vmul.f32 %v189, %v189
    %v194 = vmul.f32 %v190, %v190
    %v195 = vmul.f32 %v191, %v191
    %v196 = vmul.f32 %v192, %v192
    %v197 = vsel %vm141, %v193, 0.0
    %198 = vadd.xlane.f32.xlu0 %v197
    %v199 = vpop.xlane.xlu0 %198
    %v200 = vsel %vm141, %v194, 0.0
    %201 = vadd.xlane.f32.xlu0 %v200
    %v202 = vpop.xlane.xlu0 %201
    %v203 = vsel %vm141, %v195, 0.0
    %204 = vadd.xlane.f32.xlu0 %v203
    %v205 = vpop.xlane.xlu0 %204
    %v206 = vsel %vm141, %v196, 0.0
    %207 = vadd.xlane.f32.xlu0 %v206
    %v208 = vpop.xlane.xlu0 %207
    %v209 = vmul.f32 %v199, 0.015625
    %v210 = vmul.f32 %v202, 0.015625
    %v211 = vmul.f32 %v205, 0.015625
    %v212 = vmul.f32 %v208, 0.015625
    %v213 = vadd.f32 %v209, 1e-05
    %v214 = vadd.f32 %v210, 1e-05
    %v215 = vadd.f32 %v211, 1e-05
    %v216 = vadd.f32 %v212, 1e-05
    %v217 = vrsqrt.pop %v213
    %v218 = vmul.f32 %v217, %v213
    %v219 = vmul.f32 %v218, %v217
    %v220 = vmul.f32 0.5, %v219
    %v221 = vsub.f32 1.5, %v220
    %v222 = vmul.f32 %v217, %v221
    %vm223 = vweird.f32 %v213
    %vm224 = vweird.f32 %v217
    %vm225 = vmor %vm223, %vm224
    %v226 = vsel %vm225, %v217, %v222
    %v227 = vrsqrt.pop %v214
    %v228 = vmul.f32 %v227, %v214
    %v229 = vmul.f32 %v228, %v227
    %v230 = vmul.f32 0.5, %v229
    %v231 = vsub.f32 1.5, %v230
    %v232 = vmul.f32 %v227, %v231
    %vm233 = vweird.f32 %v214
    %vm234 = vweird.f32 %v227
    %vm235 = vmor %vm233, %vm234
    %v236 = vsel %vm235, %v227, %v232
    %v237 = vrsqrt.pop %v215
    %v238 = vmul.f32 %v237, %v215
    %v239 = vmul.f32 %v238, %v237
    %v240 = vmul.f32 0.5, %v239
    %v241 = vsub.f32 1.5, %v240
    %v242 = vmul.f32 %v237, %v241
    %vm243 = vweird.f32 %v215
    %vm244 = vweird.f32 %v237
    %vm245 = vmor %vm243, %vm244
    %v246 = vsel %vm245, %v237, %v242
    %v247 = vrsqrt.pop %v216
    %v248 = vmul.f32 %v247, %v216
    %v249 = vmul.f32 %v248, %v247
    %v250 = vmul.f32 0.5, %v249
    %v251 = vsub.f32 1.5, %v250
    %v252 = vmul.f32 %v247, %v251
    %vm253 = vweird.f32 %v216
    %vm254 = vweird.f32 %v247
    %vm255 = vmor %vm253, %vm254
    %v256 = vsel %vm255, %v247, %v252
    %v257 = vmul.f32 %v189, %v226
    %v258 = vmul.f32 %v190, %v236
    %v259 = vmul.f32 %v191, %v246
    %v260 = vmul.f32 %v192, %v256
    %v261 = vld [vmem:[%s4] sm:$0x1]
    %v263 = vperm.slane %v261, 0
    %v265 = vmul.f32 %v257, %v263
    %v266 = vmul.f32 %v258, %v263
    %v267 = vmul.f32 %v259, %v263
    %v268 = vmul.f32 %v260, %v263
    %v269 = vld [vmem:[%s5] sm:$0x1]
    %v271 = vperm.slane %v269, 0
    %v273 = vadd.f32 %v265, %v271
    %v274 = vadd.f32 %v266, %v271
    %v275 = vadd.f32 %v267, %v271
    %v276 = vadd.f32 %v268, %v271
    %v277 = vpack.c.bf16 %v273, %v273
    %v278 = vpack.c.bf16 %v274, %v274
    %v279 = vpack.c.bf16 %v275, %v275
    %v280 = vpack.c.bf16 %v276, %v276
    %vm281 = vcmask 519168
    %282 = vst.msk [vmem:[%s7] sm:$0xf] %vm281, %v277
    %283 = vst.msk [vmem:[%s7 + $0x4] sm:$0xf] %vm281, %v278
    %284 = vst.msk [vmem:[%s7 + $0x8] sm:$0xf] %vm281, %v279
    %285 = vst.msk [vmem:[%s7 + $0xc] sm:$0xf] %vm281, %v280
  $region33: #{transformer_forward.16} parent=0 // pred_fallthru
    _
  // Predicated region
  $region34: #{transformer_forward.16} parent=0 // pred_check
    _
  $region35: #{transformer_forward.16} parent=0 // pred_check_branch
    %287 = sbr.rel (0) target = $region37
  $region36: #{transformer_forward.16} parent=0 // pred_region
    _
  $region37: #{transformer_forward.16} parent=0 // pred_fallthru
    _
  // Predicated region
  $region38: #{transformer_forward.16} parent=0 // pred_check
    _
  $region39: #{transformer_forward.16} parent=0 // pred_check_branch
    %289 = sbr.rel (0) target = $region41
  $region40: #{transformer_forward.16} parent=0 // pred_region
    _
  $region41: #{transformer_forward.16} parent=0 // pred_fallthru
    _
  // Predicated region
  $region42: #{transformer_forward.16} parent=0 // pred_check
    _
  $region43: #{transformer_forward.16} parent=0 // pred_check_branch
    %291 = sbr.rel (0) target = $region45
  $region44: #{transformer_forward.16} parent=0 // pred_region
    _
  $region45: #{transformer_forward.16} parent=0 // pred_fallthru
    _
  // Predicated region
  $region46: #{transformer_forward.16} parent=0 // pred_check
    _
  $region47: #{transformer_forward.16} parent=0 // pred_check_branch
    %293 = sbr.rel (0) target = $region49
  $region48: #{transformer_forward.16} parent=0 // pred_region
    _
  $region49: #{transformer_forward.16} parent=0 // pred_fallthru
    _

// kernel: transformer_forward.21
$region0: #{transformer_forward.21}
  #allocation0 [shape = 'u32[]', space=smem, size = 0x4, offset = 0x4, fixed_abs, tag = 'smem constant byte address 0x4 - core index']
  #allocation1 [shape = 'u32[72,128]{1,0:T(1,128)}', space=vmem, size = 0x9000, scoped, tag = 'internal scratch']
  #allocation2 [shape = 'f32[32,64]{1,0:T(8,128)}', space=vmem, size = 0x4000, scoped, tag = 'scratch operand']
  %s0 = inlined_call_operand.vmem [shape: bf16[32,128], index: 0, kind: input, shape index: {}]
  %s1 = inlined_call_operand.vmem [shape: bf16[128,64], index: 1, kind: input, shape index: {}]
  %s2 = inlined_call_operand.vmem [shape: f32[1,64], index: 2, kind: input, shape index: {}]
  %s3 = inlined_call_operand.vmem [shape: f32[32,64], index: 3, kind: input, shape index: {}]
  %s4 = inlined_call_operand.hbm [shape: f32[32,64], index: 4, kind: output, shape index: {}]
  %s5 = sld [smem:[#allocation0]]
  $region34: #{transformer_forward.21} parent=0
    _
  %s7 = ssub.s32 1, %s5
  %s8 = scalar_select 0, %s7, %s5
  $region1: #{transformer_forward.21} parent=0
    #allocation3 [shape = 'u8[16384]{0}', space=vmem, size = 0x4000, scoped, tag = 'output window, operand 0, single buffered']
    #allocation4 [shape = 's32[1]{0}', space=sflag, size = 0x4, scoped, tag = 'scoped memory for transformer_forward.21']
    %9 = vsyncpa [#allocation4], 0
    // Predicated region
    $region2: #{transformer_forward.21} parent=1 // pred_check
      _
    $region3: #{transformer_forward.21} parent=1 // pred_check_branch
      %11 = sbr.rel (0) target = $region5
    $region4: #{transformer_forward.21} parent=1 // pred_region
      _
    $region5: #{transformer_forward.21} parent=1 // pred_fallthru
      _
    // Predicated region
    $region6: #{transformer_forward.21} parent=1 // pred_check
      _
    $region7: #{transformer_forward.21} parent=1 // pred_check_branch
      %13 = sbr.rel (0) target = $region9
    $region8: #{transformer_forward.21} parent=1 // pred_region
      _
    $region9: #{transformer_forward.21} parent=1 // pred_fallthru
      _
    // Predicated region
    $region10: #{transformer_forward.21} parent=1 // pred_check
      _
    $region11: #{transformer_forward.21} parent=1 // pred_check_branch
      %15 = sbr.rel (0) target = $region13
    $region12: #{transformer_forward.21} parent=1 // pred_region
      _
    $region13: #{transformer_forward.21} parent=1 // pred_fallthru
      _
    // Predicated region
    $region14: #{transformer_forward.21} parent=1 // pred_check
      _
    $region15: #{transformer_forward.21} parent=1 // pred_check_branch
      %17 = sbr.rel (0) target = $region17
    $region16: #{transformer_forward.21} parent=1 // pred_region
      _
    $region17: #{transformer_forward.21} parent=1 // pred_fallthru
      _
    %p18 = scmp.eq.s32.totalorder 0, 0
    // Predicated region
    $region18: #{transformer_forward.21} parent=1 // pred_check
      %p19 = pneg %p18
    $region19: #{transformer_forward.21} parent=1 // pred_check_branch
      %21 = sbr.rel (%p19) target = $region21
    $region20: #{transformer_forward.21} parent=1 // pred_region
      %vm22 = vcmask 523264
      %23 = vst.msk [vmem:[#allocation2] sm:$0xff] %vm22, 0.0
      %24 = vst.msk [vmem:[#allocation2 + $0x8] sm:$0xff] %vm22, 0.0
      %25 = vst.msk [vmem:[#allocation2 + $0x10] sm:$0xff] %vm22, 0.0
      %26 = vst.msk [vmem:[#allocation2 + $0x18] sm:$0xff] %vm22, 0.0
    $region21: #{transformer_forward.21} parent=1 // pred_fallthru
      _
    %v27 = vld [vmem:[#allocation2] sm:$0xff]
    %v28 = vld [vmem:[#allocation2 + $0x8] sm:$0xff]
    %v29 = vld [vmem:[#allocation2 + $0x10] sm:$0xff]
    %v30 = vld [vmem:[#allocation2 + $0x18] sm:$0xff]
    %v31 = vld [vmem:[%s0] sm:$0xf]
    %v32 = vld [vmem:[%s0 + $0x4] sm:$0xf]
    %v33 = vld [vmem:[%s0 + $0x8] sm:$0xf]
    %v34 = vld [vmem:[%s0 + $0xc] sm:$0xf]
    %v35 = vld [vmem:[%s1] sm:$0xf]
    %v36 = vld [vmem:[%s1 + $0x4] sm:$0xf]
    %v37 = vld [vmem:[%s1 + $0x8] sm:$0xf]
    %v38 = vld [vmem:[%s1 + $0xc] sm:$0xf]
    %v39 = vld [vmem:[%s1 + $0x10] sm:$0xf]
    %v40 = vld [vmem:[%s1 + $0x14] sm:$0xf]
    %v41 = vld [vmem:[%s1 + $0x18] sm:$0xf]
    %v42 = vld [vmem:[%s1 + $0x1c] sm:$0xf]
    %v43 = vld [vmem:[%s1 + $0x20] sm:$0xf]
    %v44 = vld [vmem:[%s1 + $0x24] sm:$0xf]
    %v45 = vld [vmem:[%s1 + $0x28] sm:$0xf]
    %v46 = vld [vmem:[%s1 + $0x2c] sm:$0xf]
    %v47 = vld [vmem:[%s1 + $0x30] sm:$0xf]
    %v48 = vld [vmem:[%s1 + $0x34] sm:$0xf]
    %v49 = vld [vmem:[%s1 + $0x38] sm:$0xf]
    %v50 = vld [vmem:[%s1 + $0x3c] sm:$0xf]
    %v55 = vunpack.c.l.b16 %v31
    %v56 = vunpack.c.l.b16 %v32
    %v57 = vunpack.c.l.b16 %v33
    %v58 = vunpack.c.l.b16 %v34
    %v59 = vpack.c.b16 %v56, %v55
    %v60 = vpack.c.b16 %v58, %v57
    %v79 = vunpack.c.l.b16 %v35
    %v80 = vunpack.c.l.b16 %v36
    %v81 = vunpack.c.l.b16 %v37
    %v82 = vunpack.c.l.b16 %v38
    %v83 = vunpack.c.l.b16 %v39
    %v84 = vunpack.c.l.b16 %v40
    %v85 = vunpack.c.l.b16 %v41
    %v86 = vunpack.c.l.b16 %v42
    %v87 = vunpack.c.l.b16 %v43
    %v88 = vunpack.c.l.b16 %v44
    %v89 = vunpack.c.l.b16 %v45
    %v90 = vunpack.c.l.b16 %v46
    %v91 = vunpack.c.l.b16 %v47
    %v92 = vunpack.c.l.b16 %v48
    %v93 = vunpack.c.l.b16 %v49
    %v94 = vunpack.c.l.b16 %v50
    %v95 = vpack.c.b16 %v80, %v79
    %v96 = vpack.c.b16 %v82, %v81
    %v97 = vpack.c.b16 %v84, %v83
    %v98 = vpack.c.b16 %v86, %v85
    %v99 = vpack.c.b16 %v88, %v87
    %v100 = vpack.c.b16 %v90, %v89
    %v101 = vpack.c.b16 %v92, %v91
    %v102 = vpack.c.b16 %v94, %v93
    %111 = vmatpush.bf16.msra.mxu0 %v102
    %112 = vmatpush.bf16.msra.mxu0 %v101
    %113 = vmatpush.bf16.msra.mxu0 %v100
    %114 = vmatpush.bf16.msra.mxu0 %v99
    %115 = vmatpush.bf16.msra.mxu0 %v98
    %116 = vmatpush.bf16.msra.mxu0 %v97
    %117 = vmatpush.bf16.msra.mxu0 %v96
    %118 = vmatpush.bf16.msra.mxu0 %v95
    %119 = vmatmul.bf16.gmra.mxu0 %v59
    %v120 = vpop.f32.mrf.mxu0
    %v121 = vadd.f32 0.0, %v120
    %v122 = vpop.f32.mrf.mxu0
    %v123 = vadd.f32 0.0, %v122
    %124 = vmatmul.bf16.gmra.mxu0 %v60
    %v125 = vpop.f32.mrf.mxu0
    %v126 = vadd.f32 0.0, %v125
    %v127 = vpop.f32.mrf.mxu0
    %v128 = vadd.f32 0.0, %v127
    %129 = vdwg.mxu0
    %v130 = vadd.f32 %v27, %v121
    %v131 = vadd.f32 %v28, %v123
    %v132 = vadd.f32 %v29, %v126
    %v133 = vadd.f32 %v30, %v128
    %vm134 = vcmask 523264
    %135 = vst.msk [vmem:[#allocation2] sm:$0xff] %vm134, %v130
    %136 = vst.msk [vmem:[#allocation2 + $0x8] sm:$0xff] %vm134, %v131
    %137 = vst.msk [vmem:[#allocation2 + $0x10] sm:$0xff] %vm134, %v132
    %138 = vst.msk [vmem:[#allocation2 + $0x18] sm:$0xff] %vm134, %v133
    // Predicated region
    $region22: #{transformer_forward.21} parent=1 // pred_check
      %p139 = pneg %p18
    $region23: #{transformer_forward.21} parent=1 // pred_check_branch
      %141 = sbr.rel (%p139) target = $region25
    $region24: #{transformer_forward.21} parent=1 // pred_region
      %v142 = vld [vmem:[#allocation2] sm:$0xff]
      %v143 = vld [vmem:[#allocation2 + $0x8] sm:$0xff]
      %v144 = vld [vmem:[#allocation2 + $0x10] sm:$0xff]
      %v145 = vld [vmem:[#allocation2 + $0x18] sm:$0xff]
      %v146 = vld [vmem:[%s2] sm:$0x1]
      %v148 = vperm.slane %v146, 0
      %v150 = vadd.f32 %v142, %v148
      %v151 = vadd.f32 %v143, %v148
      %v152 = vadd.f32 %v144, %v148
      %v153 = vadd.f32 %v145, %v148
      %v154 = vld [vmem:[%s3] sm:$0xff]
      %v155 = vld [vmem:[%s3 + $0x8] sm:$0xff]
      %v156 = vld [vmem:[%s3 + $0x10] sm:$0xff]
      %v157 = vld [vmem:[%s3 + $0x18] sm:$0xff]
      %v158 = vadd.f32 %v150, %v154
      %v159 = vadd.f32 %v151, %v155
      %v160 = vadd.f32 %v152, %v156
      %v161 = vadd.f32 %v153, %v157
      %162 = vst.msk [vmem:[#allocation3] sm:$0xff] %vm134, %v158
      %163 = vst.msk [vmem:[#allocation3 + $0x8] sm:$0xff] %vm134, %v159
      %164 = vst.msk [vmem:[#allocation3 + $0x10] sm:$0xff] %vm134, %v160
      %165 = vst.msk [vmem:[#allocation3 + $0x18] sm:$0xff] %vm134, %v161
    $region25: #{transformer_forward.21} parent=1 // pred_fallthru
      _
    // Predicated region
    $region26: #{transformer_forward.21} parent=1 // pred_check
      _
    $region27: #{transformer_forward.21} parent=1 // pred_check_branch
      %167 = sbr.rel (0) target = $region29
    $region28: #{transformer_forward.21} parent=1 // pred_region
      %169 = vsyncadd [#allocation4], 0
      %s170 = sshll.u32 [#allocation3], 4
      %s171 = int_to_ptr.vmem [resolvable:$true] %s170
      %s172 = sshll.u32 %s4, 4
      %s173 = int_to_ptr.hbm [resolvable:$true] %s172
      %178 = dma.vmem_to_hbm [thread:$0]  %s171, 512, %s173, [#allocation4], 128, 128, 8
    $region29: #{transformer_forward.21} parent=1 // pred_fallthru
      _
    // Predicated region
    $region30: #{transformer_forward.21} parent=1 // pred_check
      _
    $region31: #{transformer_forward.21} parent=1 // pred_check_branch
      %180 = sbr.rel (0) target = $region33
    $region32: #{transformer_forward.21} parent=1 // pred_region
      %182 = dma.done [#allocation4], 512
    $region33: #{transformer_forward.21} parent=1 // pred_fallthru
      _
    %183 = vsyncpa [#allocation4], 1

</llo_original>
